<compile_context>
chip_gen: v5e
topology: v5e:2x2
jax: 0.10.0
libtpu: 0.0.40
codegen_flags: <defaults>
</compile_context>

<pallas_src>
import functools

import jax
import jax.numpy as jnp
from jax.experimental import pallas as pl
from jax.experimental.pallas import tpu as pltpu

CP = 128  # lane-dense channel padding (all feature dims padded to 128)


def fused_gat_kernel(x_ref, w_ref, as_ref, ad_ref, b_ref, adj_ref, out_ref,
                     xp_scr, h_scr, asrc_scr, adst_scr, *, ti):
    """Grid = (phase/layer, target-row tile).

    Phase 0: layer 1 (gnn1 + ReLU) -> h_scr (VMEM only, never touches HBM).
    Phase 1: layer 2 (gnn2)        -> out.
    At the first tile of each phase the projection xp = (x|h) @ W and the a_src / a_dst
    vectors are computed once into persistent VMEM scratch; every tile then does the
    masked softmax + aggregation for its TI target rows.
    """
    p = pl.program_id(0)   # 0 -> gnn1, 1 -> gnn2 (param stacks indexed by p via BlockSpec)
    t = pl.program_id(1)   # target-row tile

    def project(src_bf16):
        # xp = src @ W : bf16 MXU inputs, f32 accumulate (once per layer).
        xp = jnp.dot(src_bf16, w_ref[0], preferred_element_type=jnp.float32)   # [N, CP]
        xp_scr[...] = xp.astype(jnp.bfloat16)
        # a_src[j] = <xp[j], att_src> as a [1, N] lane row.
        asrc_scr[...] = jax.lax.dot_general(
            as_ref[0], xp, (((1,), (1,)), ((), ())),
            preferred_element_type=jnp.float32)
        # a_dst[i] = <xp[i], att_dst> as an [N, 1] column; both attention terms now come
        # from the same f32 xp (no per-tile recomputation).
        adst_scr[...] = jnp.sum(xp * ad_ref[0], axis=-1, keepdims=True)

    @pl.when(jnp.logical_and(p == 0, t == 0))
    def _():
        project(x_ref[...])

    @pl.when(jnp.logical_and(p == 1, t == 0))
    def _():
        project(h_scr[...])

    row0 = pl.multiple_of(t * ti, ti)
    a_dst = adst_scr[pl.ds(row0, ti), :]                          # [TI, 1] f32

    # Arithmetic edge masking (no boolean selects in the [TI, N] hot loop).
    mask = adj_ref[...].astype(jnp.float32)                       # int8 {0,1} -> f32
    e = a_dst + asrc_scr[...]                                     # [TI, N]
    e = jnp.where(e > 0, e, 0.2 * e)                              # LeakyReLU(0.2)
    e = e + (mask - 1.0) * jnp.float32(1e30)                      # -inf surrogate on non-edges
    m = jnp.max(e, axis=-1, keepdims=True)
    wgt = jnp.exp(e - m) * mask
    denom = jnp.sum(wgt, axis=-1, keepdims=True)
    inv = pl.reciprocal(jnp.where(denom > 0, denom, 1.0), approx=True)   # EUP slot
    alpha = (wgt * inv).astype(jnp.bfloat16)

    # out rows = alpha @ xp  (bf16 MXU inputs, f32 accumulate) + bias
    agg = jnp.dot(alpha, xp_scr[...], preferred_element_type=jnp.float32)  # [TI, CP]
    val = agg + b_ref[0]

    @pl.when(p == 0)
    def _():
        # Layer-1 output lives only in VMEM; no HBM output writes in this phase.
        h_scr[pl.ds(row0, ti), :] = jnp.maximum(val, 0.0).astype(jnp.bfloat16)

    @pl.when(p == 1)
    def _():
        out_ref[...] = val.astype(out_ref.dtype)


def _pad2(a, rows, cols):
    return jnp.pad(a, ((0, rows - a.shape[0]), (0, cols - a.shape[1])))


def _default_row_tile():
    """TI=256 fills the 256-wide MXU on v6e/v7x; v5e (4x128x128 MXU) stays at 128."""
    try:
        kind = jax.devices()[0].device_kind.lower()
        if ("v6" in kind) or ("v7" in kind):
            return 256
    except Exception:
        pass
    return 128


def gat_simple_forward(x, adj, params, *, row_tile=None):
    """GATsimple.forward: gnn1 -> relu -> dropout(identity, eval) -> gnn2 (fused)."""
    N = x.shape[0]
    c2 = params["w2"].shape[1]

    if row_tile is None:
        row_tile = _default_row_tile()

    # Target-row tiling. Small/mid graphs are padded straight to 128 rows so adj /
    # a_src tiles are lane-dense (unmasked vld/vst); large graphs use TI-row tiles.
    if N <= CP:
        n_pad = CP
        ti = CP
    else:
        ti = row_tile
        n_pad = ((N + ti - 1) // ti) * ti
    num_tiles = n_pad // ti

    # Lane-dense zero padding of features / params; adj narrowed to int8 (1 B/slot).
    x_p = _pad2(x.astype(jnp.float32), n_pad, CP).astype(jnp.bfloat16)
    adj_p = _pad2(adj.astype(jnp.float32), n_pad, n_pad).astype(jnp.int8)

    w_stack = jnp.stack([_pad2(params["w1"].astype(jnp.float32), CP, CP),
                         _pad2(params["w2"].astype(jnp.float32), CP, CP)]
                        ).astype(jnp.bfloat16)                                    # [2,CP,CP]
    as_stack = jnp.stack([_pad2(params["att_src1"], 1, CP),
                          _pad2(params["att_src2"], 1, CP)]).astype(jnp.float32)  # [2,1,CP]
    ad_stack = jnp.stack([_pad2(params["att_dst1"], 1, CP),
                          _pad2(params["att_dst2"], 1, CP)]).astype(jnp.float32)  # [2,1,CP]
    b_stack = jnp.stack([_pad2(params["bias1"], 1, CP),
                         _pad2(params["bias2"], 1, CP)]).astype(jnp.float32)      # [2,1,CP]

    # Explicit VMEM budget (review: re-budget against v7x's 64 MiB / default scoped limits).
    vmem_bytes = (
        3 * n_pad * CP * 2        # x (resident) + xp_scr + h_scr   (bf16)
        + n_pad * CP * 4          # a_dst column scratch (lane-padded f32)
        + 8 * n_pad * 4           # a_src row scratch (sublane-padded f32)
        + 2 * ti * n_pad          # adj int8 double buffer
        + 2 * ti * CP * 4         # output f32 double buffer
        + 4 * CP * CP * 2         # parameter stacks (generous)
    )
    vmem_limit = int(min(128 << 20, max(32 << 20, vmem_bytes * 5 // 4 + (2 << 20))))

    out_pad = pl.pallas_call(
        functools.partial(fused_gat_kernel, ti=ti),
        out_shape=jax.ShapeDtypeStruct((n_pad, CP), jnp.float32),
        grid_spec=pltpu.PrefetchScalarGridSpec(
            num_scalar_prefetch=0,
            grid=(2, num_tiles),                                      # (layer, row tile)
            in_specs=[
                pl.BlockSpec((n_pad, CP), lambda p, t: (0, 0)),       # x (bf16, resident)
                pl.BlockSpec((1, CP, CP), lambda p, t: (p, 0, 0)),    # W of current layer
                pl.BlockSpec((1, 1, CP), lambda p, t: (p, 0, 0)),     # att_src
                pl.BlockSpec((1, 1, CP), lambda p, t: (p, 0, 0)),     # att_dst
                pl.BlockSpec((1, 1, CP), lambda p, t: (p, 0, 0)),     # bias
                pl.BlockSpec((ti, n_pad), lambda p, t: (t, 0)),       # adj row tile (int8)
            ],
            # Phase 0 pins the output window to block 0 and never writes it; the only
            # HBM output traffic is the layer-2 tiles written in phase 1.
            out_specs=pl.BlockSpec((ti, CP), lambda p, t: (p * t, 0)),
            scratch_shapes=[
                pltpu.VMEM((n_pad, CP), jnp.bfloat16),   # xp = (x|h) @ W (MXU-ready)
                pltpu.VMEM((n_pad, CP), jnp.bfloat16),   # h  = relu(layer-1 output)
                pltpu.VMEM((1, n_pad), jnp.float32),     # a_src row
                pltpu.VMEM((n_pad, 1), jnp.float32),     # a_dst column
            ],
        ),
        compiler_params=pltpu.CompilerParams(
            # Both axes must stay sequential: layer-2 tiles read the h scratch written
            # by ALL layer-1 tiles, and xp/a_src/a_dst scratches carry across row tiles.
            dimension_semantics=("arbitrary", "arbitrary"),
            vmem_limit_bytes=vmem_limit,
        ),
    )(x_p, w_stack, as_stack, ad_stack, b_stack, adj_p)

    return out_pad[:N, :c2]


def init_params(key, hidden_channels):
    c0, c1, c2 = hidden_channels
    ks = jax.random.split(key, 8)
    scale1 = 1.0 / jnp.sqrt(jnp.float32(c0))
    scale2 = 1.0 / jnp.sqrt(jnp.float32(c1))
    return {
        "w1": jax.random.normal(ks[0], (c0, c1), jnp.float32) * scale1,
        "att_src1": jax.random.normal(ks[1], (1, c1), jnp.float32) * 0.1,
        "att_dst1": jax.random.normal(ks[2], (1, c1), jnp.float32) * 0.1,
        "bias1": jax.random.normal(ks[3], (1, c1), jnp.float32) * 0.01,
        "w2": jax.random.normal(ks[4], (c1, c2), jnp.float32) * scale2,
        "att_src2": jax.random.normal(ks[5], (1, c2), jnp.float32) * 0.1,
        "att_dst2": jax.random.normal(ks[6], (1, c2), jnp.float32) * 0.1,
        "bias2": jax.random.normal(ks[7], (1, c2), jnp.float32) * 0.01,
    }


if __name__ == "__main__":
    key = jax.random.PRNGKey(0)
    k_x, k_p = jax.random.split(key)

    N = 16
    hidden_channels = [8, 32, 16]   # GATsimple(hidden_channels=[8, 32, 16], 'GAT')

    # Node features [N, Cin]
    x = jax.random.normal(k_x, (N, hidden_channels[0]), jnp.float32)

    # Deterministic edge_index: bidirectional ring graph (32 directed edges).
    src = jnp.concatenate([jnp.arange(N), (jnp.arange(N) + 1) % N])
    dst = jnp.concatenate([(jnp.arange(N) + 1) % N, jnp.arange(N)])
    edge_index = jnp.stack([src, dst])                        # [2, 32]
    # Dense adjacency mask: adj[target, source] = 1.0
    adj = jnp.zeros((N, N), jnp.float32).at[edge_index[1], edge_index[0]].set(1.0)

    params = init_params(k_p, hidden_channels)

    out = gat_simple_forward(x, adj, params)
    out = jax.block_until_ready(out)
    assert out.shape == (N, hidden_channels[2])
    assert bool(jnp.all(jnp.isfinite(out)))
    print("KERNEL_OK")
</pallas_src>

<mosaic_0001>
module attributes {stable_mosaic.version = 11 : i64} {
  func.func @fused_gat_kernel(%arg0: i32, %arg1: i32, %arg2: memref<128x128xbf16, #tpu.memory_space<vmem>>, %arg3: memref<1x128x128xbf16, #tpu.memory_space<vmem>>, %arg4: memref<1x1x128xf32, #tpu.memory_space<vmem>>, %arg5: memref<1x1x128xf32, #tpu.memory_space<vmem>>, %arg6: memref<1x1x128xf32, #tpu.memory_space<vmem>>, %arg7: memref<128x128xi8, #tpu.memory_space<vmem>>, %arg8: memref<128x128xf32, #tpu.memory_space<vmem>>, %arg9: memref<128x128xbf16, #tpu.memory_space<vmem>>, %arg10: memref<128x128xbf16, #tpu.memory_space<vmem>>, %arg11: memref<1x128xf32, #tpu.memory_space<vmem>>, %arg12: memref<128x1xf32, #tpu.memory_space<vmem>>) attributes {dimension_semantics = [#tpu.dimension_semantics<arbitrary>, #tpu.dimension_semantics<arbitrary>], iteration_bounds = array<i64: 2, 1>, scalar_prefetch = 0 : i64, scratch_operands = 4 : i64, tpu.core_type = #tpu.core_type<tc>, window_params = [{pipeline_mode = #tpu.pipeline_mode<synchronous>, transform_indices = @transform_0, window_bounds = array<i64: 128, 128>}, {transform_indices = @transform_1, window_bounds = array<i64: 1, 128, 128>}, {transform_indices = @transform_2, window_bounds = array<i64: 1, 1, 128>}, {transform_indices = @transform_3, window_bounds = array<i64: 1, 1, 128>}, {transform_indices = @transform_4, window_bounds = array<i64: 1, 1, 128>}, {transform_indices = @transform_5, window_bounds = array<i64: 128, 128>}, {transform_indices = @transform_6, window_bounds = array<i64: 128, 128>}]} {
    %c0_i32 = arith.constant 0 : i32
    %0 = arith.cmpi eq, %arg0, %c0_i32 : i32
    %c0_i32_0 = arith.constant 0 : i32
    %1 = arith.cmpi eq, %arg1, %c0_i32_0 : i32
    %2 = arith.andi %0, %1 : i1
    %3 = arith.extui %2 : i1 to i32
    %c0_i32_1 = arith.constant 0 : i32
    %4 = arith.cmpi ne, %3, %c0_i32_1 : i32
    scf.if %4 {
      %c0_25 = arith.constant 0 : index
      %c0_26 = arith.constant 0 : index
      %58 = vector.load %arg2[%c0_25, %c0_26] : memref<128x128xbf16, #tpu.memory_space<vmem>>, vector<128x128xbf16>
      %c0_27 = arith.constant 0 : index
      %c0_28 = arith.constant 0 : index
      %c0_29 = arith.constant 0 : index
      %59 = vector.load %arg3[%c0_27, %c0_28, %c0_29] : memref<1x128x128xbf16, #tpu.memory_space<vmem>>, vector<1x128x128xbf16>
      %60 = vector.shape_cast %59 : vector<1x128x128xbf16> to vector<128x128xbf16>
      %cst_30 = arith.constant dense<0.000000e+00> : vector<128x128xf32>
      %61 = tpu.matmul %58, %60, %cst_30 {dimension_numbers = #tpu.dot_dimension_numbers<[1], [0], [0], [1], [0, 0, 1, 1], [], []>} : vector<128x128xbf16>, vector<128x128xbf16>, vector<128x128xf32> -> vector<128x128xf32>
      %62 = arith.truncf %61 : vector<128x128xf32> to vector<128x128xbf16>
      %c0_31 = arith.constant 0 : index
      %c0_32 = arith.constant 0 : index
      %63 = vector.load %arg9[%c0_31, %c0_32] : memref<128x128xbf16, #tpu.memory_space<vmem>>, vector<128x128xbf16>
      tpu.vector_store %arg9[%c0_31, %c0_32], %62 {strides = array<i32>} : memref<128x128xbf16, #tpu.memory_space<vmem>>, vector<128x128xbf16>,
      %c0_33 = arith.constant 0 : index
      %c0_34 = arith.constant 0 : index
      %c0_35 = arith.constant 0 : index
      %64 = vector.load %arg4[%c0_33, %c0_34, %c0_35] : memref<1x1x128xf32, #tpu.memory_space<vmem>>, vector<1x1x128xf32>
      %65 = vector.shape_cast %64 : vector<1x1x128xf32> to vector<1x128xf32>
      %cst_36 = arith.constant dense<0.000000e+00> : vector<1x128xf32>
      %66 = tpu.matmul %65, %61, %cst_36 {dimension_numbers = #tpu.dot_dimension_numbers<[1], [1], [0], [0], [0, 0, 1, 0], [], []>} : vector<1x128xf32>, vector<128x128xf32>, vector<1x128xf32> -> vector<1x128xf32>
      %c0_37 = arith.constant 0 : index
      %c0_38 = arith.constant 0 : index
      %67 = vector.load %arg11[%c0_37, %c0_38] : memref<1x128xf32, #tpu.memory_space<vmem>>, vector<1x128xf32>
      tpu.vector_store %arg11[%c0_37, %c0_38], %66 {strides = array<i32>} : memref<1x128xf32, #tpu.memory_space<vmem>>, vector<1x128xf32>,
      %c0_39 = arith.constant 0 : index
      %c0_40 = arith.constant 0 : index
      %c0_41 = arith.constant 0 : index
      %68 = vector.load %arg5[%c0_39, %c0_40, %c0_41] : memref<1x1x128xf32, #tpu.memory_space<vmem>>, vector<1x1x128xf32>
      %69 = vector.shape_cast %68 : vector<1x1x128xf32> to vector<1x128xf32>
      %70 = vector.broadcast %69 : vector<1x128xf32> to vector<128x128xf32>
      %71 = arith.mulf %61, %70 : vector<128x128xf32>
      %cst_42 = arith.constant dense<0.000000e+00> : vector<128xf32>
      %72 = vector.multi_reduction <add>, %71, %cst_42 [1] : vector<128x128xf32> to vector<128xf32>
      %73 = vector.shape_cast %72 : vector<128xf32> to vector<128x1xf32>
      %c0_43 = arith.constant 0 : index
      %c0_44 = arith.constant 0 : index
      %74 = vector.load %arg12[%c0_43, %c0_44] : memref<128x1xf32, #tpu.memory_space<vmem>>, vector<128x1xf32>
      tpu.vector_store %arg12[%c0_43, %c0_44], %73 {strides = array<i32>} : memref<128x1xf32, #tpu.memory_space<vmem>>, vector<128x1xf32>,
    } else {
    }
    %c1_i32 = arith.constant 1 : i32
    %5 = arith.cmpi eq, %arg0, %c1_i32 : i32
    %c0_i32_2 = arith.constant 0 : i32
    %6 = arith.cmpi eq, %arg1, %c0_i32_2 : i32
    %7 = arith.andi %5, %6 : i1
    %8 = arith.extui %7 : i1 to i32
    %c0_i32_3 = arith.constant 0 : i32
    %9 = arith.cmpi ne, %8, %c0_i32_3 : i32
    scf.if %9 {
      %c0_25 = arith.constant 0 : index
      %c0_26 = arith.constant 0 : index
      %58 = vector.load %arg10[%c0_25, %c0_26] : memref<128x128xbf16, #tpu.memory_space<vmem>>, vector<128x128xbf16>
      %c0_27 = arith.constant 0 : index
      %c0_28 = arith.constant 0 : index
      %c0_29 = arith.constant 0 : index
      %59 = vector.load %arg3[%c0_27, %c0_28, %c0_29] : memref<1x128x128xbf16, #tpu.memory_space<vmem>>, vector<1x128x128xbf16>
      %60 = vector.shape_cast %59 : vector<1x128x128xbf16> to vector<128x128xbf16>
      %cst_30 = arith.constant dense<0.000000e+00> : vector<128x128xf32>
      %61 = tpu.matmul %58, %60, %cst_30 {dimension_numbers = #tpu.dot_dimension_numbers<[1], [0], [0], [1], [0, 0, 1, 1], [], []>} : vector<128x128xbf16>, vector<128x128xbf16>, vector<128x128xf32> -> vector<128x128xf32>
      %62 = arith.truncf %61 : vector<128x128xf32> to vector<128x128xbf16>
      %c0_31 = arith.constant 0 : index
      %c0_32 = arith.constant 0 : index
      %63 = vector.load %arg9[%c0_31, %c0_32] : memref<128x128xbf16, #tpu.memory_space<vmem>>, vector<128x128xbf16>
      tpu.vector_store %arg9[%c0_31, %c0_32], %62 {strides = array<i32>} : memref<128x128xbf16, #tpu.memory_space<vmem>>, vector<128x128xbf16>,
      %c0_33 = arith.constant 0 : index
      %c0_34 = arith.constant 0 : index
      %c0_35 = arith.constant 0 : index
      %64 = vector.load %arg4[%c0_33, %c0_34, %c0_35] : memref<1x1x128xf32, #tpu.memory_space<vmem>>, vector<1x1x128xf32>
      %65 = vector.shape_cast %64 : vector<1x1x128xf32> to vector<1x128xf32>
      %cst_36 = arith.constant dense<0.000000e+00> : vector<1x128xf32>
      %66 = tpu.matmul %65, %61, %cst_36 {dimension_numbers = #tpu.dot_dimension_numbers<[1], [1], [0], [0], [0, 0, 1, 0], [], []>} : vector<1x128xf32>, vector<128x128xf32>, vector<1x128xf32> -> vector<1x128xf32>
      %c0_37 = arith.constant 0 : index
      %c0_38 = arith.constant 0 : index
      %67 = vector.load %arg11[%c0_37, %c0_38] : memref<1x128xf32, #tpu.memory_space<vmem>>, vector<1x128xf32>
      tpu.vector_store %arg11[%c0_37, %c0_38], %66 {strides = array<i32>} : memref<1x128xf32, #tpu.memory_space<vmem>>, vector<1x128xf32>,
      %c0_39 = arith.constant 0 : index
      %c0_40 = arith.constant 0 : index
      %c0_41 = arith.constant 0 : index
      %68 = vector.load %arg5[%c0_39, %c0_40, %c0_41] : memref<1x1x128xf32, #tpu.memory_space<vmem>>, vector<1x1x128xf32>
      %69 = vector.shape_cast %68 : vector<1x1x128xf32> to vector<1x128xf32>
      %70 = vector.broadcast %69 : vector<1x128xf32> to vector<128x128xf32>
      %71 = arith.mulf %61, %70 : vector<128x128xf32>
      %cst_42 = arith.constant dense<0.000000e+00> : vector<128xf32>
      %72 = vector.multi_reduction <add>, %71, %cst_42 [1] : vector<128x128xf32> to vector<128xf32>
      %73 = vector.shape_cast %72 : vector<128xf32> to vector<128x1xf32>
      %c0_43 = arith.constant 0 : index
      %c0_44 = arith.constant 0 : index
      %74 = vector.load %arg12[%c0_43, %c0_44] : memref<128x1xf32, #tpu.memory_space<vmem>>, vector<128x1xf32>
      tpu.vector_store %arg12[%c0_43, %c0_44], %73 {strides = array<i32>} : memref<128x1xf32, #tpu.memory_space<vmem>>, vector<128x1xf32>,
    } else {
    }
    %c128_i32 = arith.constant 128 : i32
    %10 = arith.muli %arg1, %c128_i32 : i32
    %11 = tpu.assume_multiple %10, 128 : i32
    %12 = arith.index_cast %11 : i32 to index
    %c0 = arith.constant 0 : index
    %13 = vector.load %arg12[%12, %c0] : memref<128x1xf32, #tpu.memory_space<vmem>>, vector<128x1xf32>
    %c0_4 = arith.constant 0 : index
    %c0_5 = arith.constant 0 : index
    %14 = vector.load %arg7[%c0_4, %c0_5] : memref<128x128xi8, #tpu.memory_space<vmem>>, vector<128x128xi8>
    %15 = arith.sitofp %14 : vector<128x128xi8> to vector<128x128xf32>
    %c0_6 = arith.constant 0 : index
    %c0_7 = arith.constant 0 : index
    %16 = vector.load %arg11[%c0_6, %c0_7] : memref<1x128xf32, #tpu.memory_space<vmem>>, vector<1x128xf32>
    %17 = vector.broadcast %13 : vector<128x1xf32> to vector<128x128xf32>
    %18 = vector.broadcast %16 : vector<1x128xf32> to vector<128x128xf32>
    %19 = arith.addf %17, %18 : vector<128x128xf32>
    %cst = arith.constant 0.000000e+00 : f32
    %20 = vector.broadcast %cst : f32 to vector<128x128xf32>
    %21 = arith.cmpf ogt, %19, %20 : vector<128x128xf32>
    %cst_8 = arith.constant 2.000000e-01 : f32
    %22 = vector.broadcast %cst_8 : f32 to vector<128x128xf32>
    %23 = arith.mulf %22, %19 : vector<128x128xf32>
    %24 = arith.select %21, %19, %23 : vector<128x128xi1>, vector<128x128xf32>
    %cst_9 = arith.constant 1.000000e+00 : f32
    %25 = vector.broadcast %cst_9 : f32 to vector<128x128xf32>
    %26 = arith.subf %15, %25 : vector<128x128xf32>
    %cst_10 = arith.constant 1.000000e+30 : f32
    %27 = vector.broadcast %cst_10 : f32 to vector<128x128xf32>
    %28 = arith.mulf %26, %27 : vector<128x128xf32>
    %29 = arith.addf %24, %28 : vector<128x128xf32>
    %cst_11 = arith.constant dense<0xFF800000> : vector<128xf32>
    %30 = vector.multi_reduction <maximumf>, %29, %cst_11 [1] : vector<128x128xf32> to vector<128xf32>
    %31 = vector.shape_cast %30 : vector<128xf32> to vector<128x1xf32>
    %32 = vector.broadcast %31 : vector<128x1xf32> to vector<128x128xf32>
    %33 = arith.subf %29, %32 : vector<128x128xf32>
    %34 = math.exp %33 : vector<128x128xf32>
    %35 = arith.mulf %34, %15 : vector<128x128xf32>
    %cst_12 = arith.constant dense<0.000000e+00> : vector<128xf32>
    %36 = vector.multi_reduction <add>, %35, %cst_12 [1] : vector<128x128xf32> to vector<128xf32>
    %37 = vector.shape_cast %36 : vector<128xf32> to vector<128x1xf32>
    %cst_13 = arith.constant 0.000000e+00 : f32
    %38 = vector.broadcast %cst_13 : f32 to vector<128x1xf32>
    %39 = arith.cmpf ogt, %37, %38 : vector<128x1xf32>
    %cst_14 = arith.constant 1.000000e+00 : f32
    %40 = vector.broadcast %cst_14 : f32 to vector<128x1xf32>
    %41 = arith.select %39, %37, %40 : vector<128x1xi1>, vector<128x1xf32>
    %42 = tpu.reciprocal %41 {approx = true} : vector<128x1xf32> -> vector<128x1xf32>
    %43 = vector.broadcast %42 : vector<128x1xf32> to vector<128x128xf32>
    %44 = arith.mulf %35, %43 : vector<128x128xf32>
    %45 = arith.truncf %44 : vector<128x128xf32> to vector<128x128xbf16>
    %c0_15 = arith.constant 0 : index
    %c0_16 = arith.constant 0 : index
    %46 = vector.load %arg9[%c0_15, %c0_16] : memref<128x128xbf16, #tpu.memory_space<vmem>>, vector<128x128xbf16>
    %cst_17 = arith.constant dense<0.000000e+00> : vector<128x128xf32>
    %47 = tpu.matmul %45, %46, %cst_17 {dimension_numbers = #tpu.dot_dimension_numbers<[1], [0], [0], [1], [0, 0, 1, 1], [], []>} : vector<128x128xbf16>, vector<128x128xbf16>, vector<128x128xf32> -> vector<128x128xf32>
    %c0_18 = arith.constant 0 : index
    %c0_19 = arith.constant 0 : index
    %c0_20 = arith.constant 0 : index
    %48 = vector.load %arg6[%c0_18, %c0_19, %c0_20] : memref<1x1x128xf32, #tpu.memory_space<vmem>>, vector<1x1x128xf32>
    %49 = vector.shape_cast %48 : vector<1x1x128xf32> to vector<1x128xf32>
    %50 = vector.broadcast %49 : vector<1x128xf32> to vector<128x128xf32>
    %51 = arith.addf %47, %50 : vector<128x128xf32>
    %c0_i32_21 = arith.constant 0 : i32
    %52 = arith.cmpi eq, %arg0, %c0_i32_21 : i32
    %53 = arith.extui %52 : i1 to i32
    %c0_i32_22 = arith.constant 0 : i32
    %54 = arith.cmpi ne, %53, %c0_i32_22 : i32
    scf.if %54 {
      %cst_25 = arith.constant 0.000000e+00 : f32
      %58 = vector.broadcast %cst_25 : f32 to vector<128x128xf32>
      %59 = arith.maximumf %51, %58 : vector<128x128xf32>
      %60 = arith.truncf %59 : vector<128x128xf32> to vector<128x128xbf16>
      %61 = arith.index_cast %11 : i32 to index
      %c0_26 = arith.constant 0 : index
      %62 = vector.load %arg10[%61, %c0_26] : memref<128x128xbf16, #tpu.memory_space<vmem>>, vector<128x128xbf16>
      tpu.vector_store %arg10[%61, %c0_26], %60 {strides = array<i32>} : memref<128x128xbf16, #tpu.memory_space<vmem>>, vector<128x128xbf16>,
    } else {
    }
    %c1_i32_23 = arith.constant 1 : i32
    %55 = arith.cmpi eq, %arg0, %c1_i32_23 : i32
    %56 = arith.extui %55 : i1 to i32
    %c0_i32_24 = arith.constant 0 : i32
    %57 = arith.cmpi ne, %56, %c0_i32_24 : i32
    scf.if %57 {
      %c0_25 = arith.constant 0 : index
      %c0_26 = arith.constant 0 : index
      %58 = vector.load %arg8[%c0_25, %c0_26] : memref<128x128xf32, #tpu.memory_space<vmem>>, vector<128x128xf32>
      tpu.vector_store %arg8[%c0_25, %c0_26], %51 {strides = array<i32>} : memref<128x128xf32, #tpu.memory_space<vmem>>, vector<128x128xf32>,
    } else {
    }
    return
  }
  func.func @transform_0(%arg0: i32, %arg1: i32) -> (i32, i32) {
    %c0_i32 = arith.constant 0 : i32
    %c0_i32_0 = arith.constant 0 : i32
    %c0_i32_1 = arith.constant 0 : i32
    return %c0_i32, %c0_i32_0 : i32, i32
  }
  func.func @transform_1(%arg0: i32, %arg1: i32) -> (i32, i32, i32) {
    %c0_i32 = arith.constant 0 : i32
    %c0_i32_0 = arith.constant 0 : i32
    %c0_i32_1 = arith.constant 0 : i32
    return %arg0, %c0_i32, %c0_i32_0 : i32, i32, i32
  }
  func.func @transform_2(%arg0: i32, %arg1: i32) -> (i32, i32, i32) {
    %c0_i32 = arith.constant 0 : i32
    %c0_i32_0 = arith.constant 0 : i32
    %c0_i32_1 = arith.constant 0 : i32
    return %arg0, %c0_i32, %c0_i32_0 : i32, i32, i32
  }
  func.func @transform_3(%arg0: i32, %arg1: i32) -> (i32, i32, i32) {
    %c0_i32 = arith.constant 0 : i32
    %c0_i32_0 = arith.constant 0 : i32
    %c0_i32_1 = arith.constant 0 : i32
    return %arg0, %c0_i32, %c0_i32_0 : i32, i32, i32
  }
  func.func @transform_4(%arg0: i32, %arg1: i32) -> (i32, i32, i32) {
    %c0_i32 = arith.constant 0 : i32
    %c0_i32_0 = arith.constant 0 : i32
    %c0_i32_1 = arith.constant 0 : i32
    return %arg0, %c0_i32, %c0_i32_0 : i32, i32, i32
  }
  func.func @transform_5(%arg0: i32, %arg1: i32) -> (i32, i32) {
    %c0_i32 = arith.constant 0 : i32
    %c0_i32_0 = arith.constant 0 : i32
    return %arg1, %c0_i32 : i32, i32
  }
  func.func @transform_6(%arg0: i32, %arg1: i32) -> (i32, i32) {
    %0 = arith.muli %arg0, %arg1 : i32
    %c0_i32 = arith.constant 0 : i32
    %c0_i32_0 = arith.constant 0 : i32
    return %0, %c0_i32 : i32, i32
  }
}

</mosaic_0001>

<llo_original>
// kernel: tpu_custom_call.1
$region0: #{tpu_custom_call.1}
  #allocation0 [shape = 'u32[]', space=smem, size = 0x4, offset = 0x4, fixed_abs, tag = 'smem constant byte address 0x4 - core index']
  #allocation1 [shape = 'u32[72,128]{1,0:T(1,128)}', space=vmem, size = 0x9000, scoped, tag = 'internal scratch']
  #allocation2 [shape = 'bf16[128,128]{1,0:T(8,128)(2,1)}', space=vmem, size = 0x8000, scoped, tag = 'scratch operand']
  #allocation3 [shape = 'bf16[128,128]{1,0:T(8,128)(2,1)}', space=vmem, size = 0x8000, scoped, tag = 'scratch operand']
  #allocation4 [shape = 'f32[1,128]{1,0:T(1,128)}', space=vmem, size = 0x200, scoped, tag = 'scratch operand']
  #allocation5 [shape = 'f32[128,1]{1,0:T(8,128)}', space=vmem, size = 0x10000, scoped, tag = 'scratch operand']
  %s0 = inlined_call_operand.hbm [shape: bf16[128,128], index: 0, kind: input, shape index: {}]
  %s1 = inlined_call_operand.hbm [shape: bf16[2,128,128], index: 1, kind: input, shape index: {}]
  %s2 = inlined_call_operand.hbm [shape: f32[2,1,128], index: 2, kind: input, shape index: {}]
  %s3 = inlined_call_operand.vmem [shape: f32[2,1,128], index: 3, kind: input, shape index: {}]
  %s4 = inlined_call_operand.hbm [shape: f32[2,1,128], index: 4, kind: input, shape index: {}]
  %s5 = inlined_call_operand.hbm [shape: s8[128,128], index: 5, kind: input, shape index: {}]
  %s6 = inlined_call_operand.hbm [shape: f32[128,128], index: 6, kind: output, shape index: {}]
  %s7 = sld [smem:[#allocation0]]
  $region93: #{tpu_custom_call.1} parent=0
    _
  %s9 = ssub.s32 1, %s7
  %s10 = scalar_select 0, %s9, %s7
  $region1: #{tpu_custom_call.1} parent=0
    #allocation6 [shape = 'u8[32768]{0}', space=vmem, size = 0x8000, scoped, tag = 'input window, operand 0, single buffered']
    #allocation7 [shape = 's32[2]{0}', space=sflag, size = 0x8, scoped, tag = 'scoped memory for tpu_custom_call.1']
    #allocation8 [shape = 's32[2]{0}', space=sflag, size = 0x8, scoped, tag = 'scoped memory for tpu_custom_call.1']
    #allocation9 [shape = 'u8[65536]{0}', space=vmem, size = 0x10000, scoped, tag = 'input window, operand 1']
    #allocation10 [shape = 's32[2]{0}', space=sflag, size = 0x8, scoped, tag = 'scoped memory for tpu_custom_call.1']
    #allocation11 [shape = 'u8[1024]{0}', space=vmem, size = 0x400, scoped, tag = 'input window, operand 2']
    #allocation12 [shape = 'u8[1024]{0}', space=vmem, size = 0x400, scoped, tag = 'input window, operand 4']
    #allocation13 [shape = 's32[2]{0}', space=sflag, size = 0x8, scoped, tag = 'scoped memory for tpu_custom_call.1']
    #allocation14 [shape = 'u8[16384]{0}', space=vmem, size = 0x4000, scoped, tag = 'input window, operand 5, single buffered']
    #allocation15 [shape = 'u8[131072]{0}', space=vmem, size = 0x20000, scoped, tag = 'output window, operand 0']
    %11 = vsyncpa [#allocation7], 0
    %12 = vsyncpa [#allocation10], 0
    %s13 = scalar_lea.sflag [#allocation10], 1
    %14 = vsyncpa %s13, 0
    %15 = vsyncpa [#allocation13], 0
    %s16 = scalar_lea.sflag [#allocation13], 1
    %17 = vsyncpa %s16, 0
    %18 = vsyncpa [#allocation8], 0
    %s19 = scalar_lea.sflag [#allocation8], 1
    %20 = vsyncpa %s19, 0
    loop: start=0, step=1, limit=4
    $region2: #{tpu_custom_call.1} parent=1 // loop_pre_header
      _
    $region3: #{tpu_custom_call.1} parent=1 // loop_header
      %s22 = sphi 0, %s26
      %p23 = scmp.ge.s32.totalorder %s22, 4
      %s29 = sphi 0, %s41
      %s30 = sphi 0, %s37
      %s31 = sphi 0, %s29
      %s32 = sphi 0, %s30
      %s33 = sphi 0, %s31
      %s34 = sphi 0, %s32
      %s42 = sphi 0, %s42
      %s44 = sphi 0, %s42
      %s45 = sphi 0, %s44
      %s59 = sphi 0, %s45
      %s65 = sphi 0, %s67
      %s68 = sphi 0, %s65
      %s69 = sphi 0, %s68
      %s85 = sphi 0, %s69
      %s91 = sphi 0, %s93
      %s94 = sphi 0, %s91
      %s95 = sphi 0, %s94
      %s111 = sphi 0, %s95
      %s117 = sphi 0, %s119
      %s120 = sphi 0, %s117
      %s121 = sphi 0, %s120
      %s137 = sphi 0, %s121
      %s143 = sphi 0, %s145
      %s146 = sphi 0, %s143
      %s147 = sphi 0, %s146
      %s163 = sphi 0, %s147
      %s169 = sphi 0, %s171
      %s172 = sphi 0, %s169
      %s173 = sphi 0, %s172
      %s189 = sphi 0, %s173
      %s197 = sphi 0, %s199
      %s200 = sphi 0, %s197
      %s201 = sphi 0, %s200
      %s217 = sphi 0, %s201
    $region4: #{tpu_custom_call.1} parent=1 // loop_header_branch
      %25 = sbr.rel (%p23) target = $region8
    $region5: #{tpu_custom_call.1} parent=1 // loop_body
      %s27 = ssub.s32 %s22, 1
      %s28 = ssub.s32 %s22, 2
      %s35 = sadd.s32 1, %s30
      %p36 = scmp.ge.s32.totalorder %s35, 1
      %s37 = scalar_select %p36, 0, %s35
      %s38 = sadd.s32 1, %s29
      %s39 = scalar_select %p36, %s38, %s29
      %p40 = scmp.ge.s32.totalorder %s39, 2
      %s41 = scalar_select %p40, 0, %s39
      %s43 = sadd.s32 %s42, 1
      %p46 = scmp.eq.s32.totalorder %s22, 1
      %p47 = scmp.ne.s32.totalorder %s42, %s44
      %p48 = scmp.eq.s32.totalorder %s22, 0
      %p49 = por %p47, %p48
      %p50 = scmp.ne.s32.totalorder %s42, %s44
      %p51 = scmp.eq.s32.totalorder %s27, 1
      %p52 = por %p50, %p51
      %p53 = scmp.ne.s32.totalorder %s44, %s45
      %p54 = scmp.eq.s32.totalorder %s27, 0
      %p55 = por %p53, %p54
      %p56 = scmp.ne.s32.totalorder %s44, %s45
      %p57 = scmp.eq.s32.totalorder %s28, 1
      %p58 = por %p56, %p57
      %p60 = scmp.ne.s32.totalorder %s45, %s59
      %p61 = scmp.eq.s32.totalorder %s28, 0
      %p62 = por %p60, %p61
      %s63 = ssub.s32 %s29, %s41
      %p64 = scmp.eq.s32.totalorder %s63, 0
      %s66 = sadd.s32 %s65, 1
      %s67 = scalar_select %p64, %s65, %s66
      %p70 = pneg %p64
      %p71 = scmp.eq.s32.totalorder %s22, 1
      %p72 = por %p70, %p71
      %p73 = scmp.ne.s32.totalorder %s65, %s68
      %p74 = scmp.eq.s32.totalorder %s22, 0
      %p75 = por %p73, %p74
      %p76 = scmp.ne.s32.totalorder %s65, %s68
      %p77 = scmp.eq.s32.totalorder %s27, 1
      %p78 = por %p76, %p77
      %p79 = scmp.ne.s32.totalorder %s68, %s69
      %p80 = scmp.eq.s32.totalorder %s27, 0
      %p81 = por %p79, %p80
      %p82 = scmp.ne.s32.totalorder %s68, %s69
      %p83 = scmp.eq.s32.totalorder %s28, 1
      %p84 = por %p82, %p83
      %p86 = scmp.ne.s32.totalorder %s69, %s85
      %p87 = scmp.eq.s32.totalorder %s28, 0
      %p88 = por %p86, %p87
      %s89 = ssub.s32 %s29, %s41
      %p90 = scmp.eq.s32.totalorder %s89, 0
      %s92 = sadd.s32 %s91, 1
      %s93 = scalar_select %p90, %s91, %s92
      %p96 = pneg %p90
      %p97 = scmp.eq.s32.totalorder %s22, 1
      %p98 = por %p96, %p97
      %p99 = scmp.ne.s32.totalorder %s91, %s94
      %p100 = scmp.eq.s32.totalorder %s22, 0
      %p101 = por %p99, %p100
      %p102 = scmp.ne.s32.totalorder %s91, %s94
      %p103 = scmp.eq.s32.totalorder %s27, 1
      %p104 = por %p102, %p103
      %p105 = scmp.ne.s32.totalorder %s94, %s95
      %p106 = scmp.eq.s32.totalorder %s27, 0
      %p107 = por %p105, %p106
      %p108 = scmp.ne.s32.totalorder %s94, %s95
      %p109 = scmp.eq.s32.totalorder %s28, 1
      %p110 = por %p108, %p109
      %p112 = scmp.ne.s32.totalorder %s95, %s111
      %p113 = scmp.eq.s32.totalorder %s28, 0
      %p114 = por %p112, %p113
      %s115 = ssub.s32 %s29, %s41
      %p116 = scmp.eq.s32.totalorder %s115, 0
      %s118 = sadd.s32 %s117, 1
      %s119 = scalar_select %p116, %s117, %s118
      %p122 = pneg %p116
      %p123 = scmp.eq.s32.totalorder %s22, 1
      %p124 = por %p122, %p123
      %p125 = scmp.ne.s32.totalorder %s117, %s120
      %p126 = scmp.eq.s32.totalorder %s22, 0
      %p127 = por %p125, %p126
      %p128 = scmp.ne.s32.totalorder %s117, %s120
      %p129 = scmp.eq.s32.totalorder %s27, 1
      %p130 = por %p128, %p129
      %p131 = scmp.ne.s32.totalorder %s120, %s121
      %p132 = scmp.eq.s32.totalorder %s27, 0
      %p133 = por %p131, %p132
      %p134 = scmp.ne.s32.totalorder %s120, %s121
      %p135 = scmp.eq.s32.totalorder %s28, 1
      %p136 = por %p134, %p135
      %p138 = scmp.ne.s32.totalorder %s121, %s137
      %p139 = scmp.eq.s32.totalorder %s28, 0
      %p140 = por %p138, %p139
      %s141 = ssub.s32 %s29, %s41
      %p142 = scmp.eq.s32.totalorder %s141, 0
      %s144 = sadd.s32 %s143, 1
      %s145 = scalar_select %p142, %s143, %s144
      %p148 = pneg %p142
      %p149 = scmp.eq.s32.totalorder %s22, 1
      %p150 = por %p148, %p149
      %p151 = scmp.ne.s32.totalorder %s143, %s146
      %p152 = scmp.eq.s32.totalorder %s22, 0
      %p153 = por %p151, %p152
      %p154 = scmp.ne.s32.totalorder %s143, %s146
      %p155 = scmp.eq.s32.totalorder %s27, 1
      %p156 = por %p154, %p155
      %p157 = scmp.ne.s32.totalorder %s146, %s147
      %p158 = scmp.eq.s32.totalorder %s27, 0
      %p159 = por %p157, %p158
      %p160 = scmp.ne.s32.totalorder %s146, %s147
      %p161 = scmp.eq.s32.totalorder %s28, 1
      %p162 = por %p160, %p161
      %p164 = scmp.ne.s32.totalorder %s147, %s163
      %p165 = scmp.eq.s32.totalorder %s28, 0
      %p166 = por %p164, %p165
      %s167 = ssub.s32 %s30, %s37
      %p168 = scmp.eq.s32.totalorder %s167, 0
      %s170 = sadd.s32 %s169, 1
      %s171 = scalar_select %p168, %s169, %s170
      %p174 = pneg %p168
      %p175 = scmp.eq.s32.totalorder %s22, 1
      %p176 = por %p174, %p175
      %p177 = scmp.ne.s32.totalorder %s169, %s172
      %p178 = scmp.eq.s32.totalorder %s22, 0
      %p179 = por %p177, %p178
      %p180 = scmp.ne.s32.totalorder %s169, %s172
      %p181 = scmp.eq.s32.totalorder %s27, 1
      %p182 = por %p180, %p181
      %p183 = scmp.ne.s32.totalorder %s172, %s173
      %p184 = scmp.eq.s32.totalorder %s27, 0
      %p185 = por %p183, %p184
      %p186 = scmp.ne.s32.totalorder %s172, %s173
      %p187 = scmp.eq.s32.totalorder %s28, 1
      %p188 = por %p186, %p187
      %p190 = scmp.ne.s32.totalorder %s173, %s189
      %p191 = scmp.eq.s32.totalorder %s28, 0
      %p192 = por %p190, %p191
      %s193 = smul.u32 %s29, %s30
      %s194 = smul.u32 %s41, %s37
      %s195 = ssub.s32 %s193, %s194
      %p196 = scmp.eq.s32.totalorder %s195, 0
      %s198 = sadd.s32 %s197, 1
      %s199 = scalar_select %p196, %s197, %s198
      %p202 = pneg %p196
      %p203 = scmp.eq.s32.totalorder %s22, 1
      %p204 = por %p202, %p203
      %p205 = scmp.ne.s32.totalorder %s197, %s200
      %p206 = scmp.eq.s32.totalorder %s22, 0
      %p207 = por %p205, %p206
      %p208 = scmp.ne.s32.totalorder %s197, %s200
      %p209 = scmp.eq.s32.totalorder %s27, 1
      %p210 = por %p208, %p209
      %p211 = scmp.ne.s32.totalorder %s200, %s201
      %p212 = scmp.eq.s32.totalorder %s27, 0
      %p213 = por %p211, %p212
      %p214 = scmp.ne.s32.totalorder %s200, %s201
      %p215 = scmp.eq.s32.totalorder %s28, 1
      %p216 = por %p214, %p215
      %p218 = scmp.ne.s32.totalorder %s201, %s217
      %p219 = scmp.eq.s32.totalorder %s28, 0
      %p220 = por %p218, %p219
      %p221 = scmp.le.s32.totalorder 1, %s22
      %p222 = scmp.lt.s32.totalorder %s22, 3
      %p223 = pnand %p221, %p222
      %p224 = pneg %p223
      // Predicated region
      $region9: #{tpu_custom_call.1} parent=5 // pred_check
        _
      $region10: #{tpu_custom_call.1} parent=5 // pred_check_branch
        %226 = sbr.rel (%p223) target = $region12
      $region11: #{tpu_custom_call.1} parent=5 // pred_region
        %s227 = ssub.s32 %s22, 1
        // Predicated region
        $region13: #{tpu_custom_call.1} parent=11 // pred_check
          %p228 = pneg %p55
        $region14: #{tpu_custom_call.1} parent=11 // pred_check_branch
          %230 = sbr.rel (%p228) target = $region16
        $region15: #{tpu_custom_call.1} parent=11 // pred_region
          %232 = vsyncadd [#allocation7], 0
          %s233 = sshll.u32 %s0, 4
          %s234 = int_to_ptr.hbm [resolvable:$true] %s233
          %s235 = sshll.u32 [#allocation6], 4
          %s236 = int_to_ptr.vmem [resolvable:$true] %s235
          %241 = dma.hbm_to_vmem [thread:$0]  %s234, 1024, %s236, [#allocation7], 64, 64, 4
        $region16: #{tpu_custom_call.1} parent=11 // pred_fallthru
          _
        // Predicated region
        $region17: #{tpu_custom_call.1} parent=11 // pred_check
          %p242 = pneg %p185
        $region18: #{tpu_custom_call.1} parent=11 // pred_check_branch
          %244 = sbr.rel (%p242) target = $region20
        $region19: #{tpu_custom_call.1} parent=11 // pred_region
          %s245 = smul.u32 4, %s32
          %247 = vsyncadd [#allocation13], 0
          %s248 = smul.addr %s245, 8
          %s249 = scalar_lea.hbm %s5, %s248
          %s250 = sshll.u32 %s249, 4
          %s251 = int_to_ptr.hbm [resolvable:$true] %s250
          %s252 = sshll.u32 [#allocation14], 4
          %s253 = int_to_ptr.vmem [resolvable:$true] %s252
          %258 = dma.hbm_to_vmem [thread:$0]  %s251, 512, %s253, [#allocation13], 128, 128, 8
        $region20: #{tpu_custom_call.1} parent=11 // pred_fallthru
          _
      $region12: #{tpu_custom_call.1} parent=5 // pred_fallthru
        _
      %p259 = scmp.lt.s32.totalorder %s22, 2
      // Predicated region
      $region21: #{tpu_custom_call.1} parent=5 // pred_check
        %p260 = pneg %p259
      $region22: #{tpu_custom_call.1} parent=5 // pred_check_branch
        %262 = sbr.rel (%p260) target = $region24
      $region23: #{tpu_custom_call.1} parent=5 // pred_region
        // Predicated region
        $region25: #{tpu_custom_call.1} parent=23 // pred_check
          %p263 = pneg %p75
        $region26: #{tpu_custom_call.1} parent=23 // pred_check_branch
          %265 = sbr.rel (%p263) target = $region28
        $region27: #{tpu_custom_call.1} parent=23 // pred_region
          %s266 = sand.u32 %s22, 1
          %s267 = scalar_lea.sflag [#allocation10], %s266
          %s268 = sand.u32 %s65, 1
          %s269 = smul.addr %s268, 64
          %s270 = scalar_lea.vmem [#allocation9], %s269
          %272 = vsyncadd %s267, 0
          %s273 = smul.addr %s29, 16
          %s274 = smul.addr %s273, 4
          %s275 = scalar_lea.hbm %s1, %s274
          %s276 = sshll.u32 %s275, 4
          %s277 = int_to_ptr.hbm [resolvable:$true] %s276
          %s278 = sshll.u32 %s270, 4
          %s279 = int_to_ptr.vmem [resolvable:$true] %s278
          %284 = dma.hbm_to_vmem [thread:$0]  %s277, 1024, %s279, %s267, 64, 64, 4
        $region28: #{tpu_custom_call.1} parent=23 // pred_fallthru
          _
        // Predicated region
        $region29: #{tpu_custom_call.1} parent=23 // pred_check
          %p285 = pneg %p101
        $region30: #{tpu_custom_call.1} parent=23 // pred_check_branch
          %287 = sbr.rel (%p285) target = $region32
        $region31: #{tpu_custom_call.1} parent=23 // pred_region
          %s288 = sand.u32 %s22, 1
          %s289 = scalar_lea.sflag [#allocation10], %s288
          %s290 = sand.u32 %s91, 1
          %s291 = scalar_lea.vmem [#allocation11], %s290
          %293 = vsyncadd %s289, 0
          %s294 = scalar_lea.hbm %s2, %s29
          %s296 = sshll.u32 %s294, 4
          %s297 = int_to_ptr.hbm [resolvable:$true] %s296
          %s298 = sshll.u32 %s291, 4
          %s299 = int_to_ptr.vmem [resolvable:$true] %s298
          %301 = dma.hbm_to_vmem [thread:$0]  %s297, 16, %s299, %s289
        $region32: #{tpu_custom_call.1} parent=23 // pred_fallthru
          _
        // Predicated region
        $region33: #{tpu_custom_call.1} parent=23 // pred_check
          %p302 = pneg %p127
        $region34: #{tpu_custom_call.1} parent=23 // pred_check_branch
          %304 = sbr.rel (%p302) target = $region36
        $region35: #{tpu_custom_call.1} parent=23 // pred_region
          %p305 = scmp.lt.s32.totalorder %s29, 1
          %s306 = scalar_select %p305, %s29, 1
          %s307 = scalar_lea.vmem %s3, %s306
        $region36: #{tpu_custom_call.1} parent=23 // pred_fallthru
          _
        // Predicated region
        $region37: #{tpu_custom_call.1} parent=23 // pred_check
          %p308 = pneg %p153
        $region38: #{tpu_custom_call.1} parent=23 // pred_check_branch
          %310 = sbr.rel (%p308) target = $region40
        $region39: #{tpu_custom_call.1} parent=23 // pred_region
          %s311 = sand.u32 %s22, 1
          %s312 = scalar_lea.sflag [#allocation13], %s311
          %s313 = sand.u32 %s143, 1
          %s314 = scalar_lea.vmem [#allocation12], %s313
          %316 = vsyncadd %s312, 0
          %s317 = scalar_lea.hbm %s4, %s29
          %s319 = sshll.u32 %s317, 4
          %s320 = int_to_ptr.hbm [resolvable:$true] %s319
          %s321 = sshll.u32 %s314, 4
          %s322 = int_to_ptr.vmem [resolvable:$true] %s321
          %324 = dma.hbm_to_vmem [thread:$0]  %s320, 16, %s322, %s312
        $region40: #{tpu_custom_call.1} parent=23 // pred_fallthru
          _
      $region24: #{tpu_custom_call.1} parent=5 // pred_fallthru
        _
      %p325 = scmp.le.s32.totalorder 1, %s22
      %p326 = scmp.lt.s32.totalorder %s22, 3
      %p327 = pnand %p325, %p326
      %p328 = pneg %p327
      // Predicated region
      $region41: #{tpu_custom_call.1} parent=5 // pred_check
        _
      $region42: #{tpu_custom_call.1} parent=5 // pred_check_branch
        %330 = sbr.rel (%p327) target = $region44
      $region43: #{tpu_custom_call.1} parent=5 // pred_region
        %s331 = ssub.s32 %s22, 1
        // Predicated region
        $region45: #{tpu_custom_call.1} parent=43 // pred_check
          %p332 = pneg %p55
        $region46: #{tpu_custom_call.1} parent=43 // pred_check_branch
          %334 = sbr.rel (%p332) target = $region48
        $region47: #{tpu_custom_call.1} parent=43 // pred_region
          %336 = dma.done [#allocation7], 1024
        $region48: #{tpu_custom_call.1} parent=43 // pred_fallthru
          _
        %s337 = sand.u32 %s27, 1
        %s338 = scalar_lea.sflag [#allocation10], %s337
        %s339 = sand.u32 %s68, 1
        %s340 = smul.addr %s339, 64
        %s341 = scalar_lea.vmem [#allocation9], %s340
        // Predicated region
        $region49: #{tpu_custom_call.1} parent=43 // pred_check
          %p342 = pneg %p81
        $region50: #{tpu_custom_call.1} parent=43 // pred_check_branch
          %344 = sbr.rel (%p342) target = $region52
        $region51: #{tpu_custom_call.1} parent=43 // pred_region
          %346 = dma.done %s338, 1024
        $region52: #{tpu_custom_call.1} parent=43 // pred_fallthru
          _
        %s347 = sand.u32 %s27, 1
        %s348 = scalar_lea.sflag [#allocation10], %s347
        %s349 = sand.u32 %s94, 1
        %s350 = scalar_lea.vmem [#allocation11], %s349
        // Predicated region
        $region53: #{tpu_custom_call.1} parent=43 // pred_check
          %p351 = pneg %p107
        $region54: #{tpu_custom_call.1} parent=43 // pred_check_branch
          %353 = sbr.rel (%p351) target = $region56
        $region55: #{tpu_custom_call.1} parent=43 // pred_region
          %355 = dma.done %s348, 16
        $region56: #{tpu_custom_call.1} parent=43 // pred_fallthru
          _
        %s356 = sand.u32 %s27, 1
        %s357 = scalar_lea.sflag [#allocation13], %s356
        %s358 = sand.u32 %s146, 1
        %s359 = scalar_lea.vmem [#allocation12], %s358
        // Predicated region
        $region57: #{tpu_custom_call.1} parent=43 // pred_check
          %p360 = pneg %p159
        $region58: #{tpu_custom_call.1} parent=43 // pred_check_branch
          %362 = sbr.rel (%p360) target = $region60
        $region59: #{tpu_custom_call.1} parent=43 // pred_region
          %364 = dma.done %s357, 16
        $region60: #{tpu_custom_call.1} parent=43 // pred_fallthru
          _
        // Predicated region
        $region61: #{tpu_custom_call.1} parent=43 // pred_check
          %p365 = pneg %p185
        $region62: #{tpu_custom_call.1} parent=43 // pred_check_branch
          %367 = sbr.rel (%p365) target = $region64
        $region63: #{tpu_custom_call.1} parent=43 // pred_region
          %369 = dma.done [#allocation13], 512
        $region64: #{tpu_custom_call.1} parent=43 // pred_fallthru
          _
        %p370 = pneg %p55
        %p371 = pneg %p52
        %s372 = sand.u32 %s27, 1
        %s373 = scalar_lea.sflag [#allocation10], %s372
        %s374 = sand.u32 %s68, 1
        %s375 = smul.addr %s374, 64
        %s376 = scalar_lea.vmem [#allocation9], %s375
        %p377 = pneg %p81
        %p378 = pneg %p78
        %s379 = sand.u32 %s27, 1
        %s380 = scalar_lea.sflag [#allocation10], %s379
        %s381 = sand.u32 %s94, 1
        %s382 = scalar_lea.vmem [#allocation11], %s381
        %p383 = pneg %p107
        %p384 = pneg %p104
        %p385 = scmp.lt.s32.totalorder %s31, 1
        %s386 = scalar_select %p385, %s31, 1
        %s387 = scalar_lea.vmem %s3, %s386
        %p388 = pneg %p133
        %p389 = pneg %p130
        %s390 = sand.u32 %s27, 1
        %s391 = scalar_lea.sflag [#allocation13], %s390
        %s392 = sand.u32 %s146, 1
        %s393 = scalar_lea.vmem [#allocation12], %s392
        %p394 = pneg %p159
        %p395 = pneg %p156
        %p396 = pneg %p185
        %p397 = pneg %p182
        %p398 = pneg %p213
        %p399 = pneg %p210
        %s400 = sand.u32 %s200, 1
        %s401 = scalar_lea.sflag [#allocation8], %s400
        %s402 = sand.u32 %s200, 1
        %s403 = smul.addr %s402, 128
        %s404 = scalar_lea.vmem [#allocation15], %s403
        %p405 = scmp.lt.s32.totalorder %s31, 1
        %s406 = scalar_select %p405, %s31, 1
        %s407 = scalar_lea.vmem %s3, %s406
        %s408 = smul.u32 4, %s32
        %s409 = smul.u32 %s31, %s32
        %s410 = smul.u32 16, %s409
        %p411 = scmp.eq.s32.totalorder %s31, 0
        %p412 = scmp.eq.s32.totalorder %s32, 0
        %p413 = pnand %p411, %p412
        %p414 = pneg %p413
        // Predicated region
        $region65: #{tpu_custom_call.1} parent=43 // pred_check
          _
        $region66: #{tpu_custom_call.1} parent=43 // pred_check_branch
          %416 = sbr.rel (%p413) target = $region68
        $region67: #{tpu_custom_call.1} parent=43 // pred_region
          %v417 = vld [vmem:[#allocation6] sm:$0xf]
          %v418 = vld [vmem:[#allocation6 + $0x4] sm:$0xf]
          %v419 = vld [vmem:[#allocation6 + $0x8] sm:$0xf]
          %v420 = vld [vmem:[#allocation6 + $0xc] sm:$0xf]
          %v421 = vld [vmem:[#allocation6 + $0x10] sm:$0xf]
          %v422 = vld [vmem:[#allocation6 + $0x14] sm:$0xf]
          %v423 = vld [vmem:[#allocation6 + $0x18] sm:$0xf]
          %v424 = vld [vmem:[#allocation6 + $0x1c] sm:$0xf]
          %v425 = vld [vmem:[#allocation6 + $0x20] sm:$0xf]
          %v426 = vld [vmem:[#allocation6 + $0x24] sm:$0xf]
          %v427 = vld [vmem:[#allocation6 + $0x28] sm:$0xf]
          %v428 = vld [vmem:[#allocation6 + $0x2c] sm:$0xf]
          %v429 = vld [vmem:[#allocation6 + $0x30] sm:$0xf]
          %v430 = vld [vmem:[#allocation6 + $0x34] sm:$0xf]
          %v431 = vld [vmem:[#allocation6 + $0x38] sm:$0xf]
          %v432 = vld [vmem:[#allocation6 + $0x3c] sm:$0xf]
          %v433 = vld [vmem:[%s341] sm:$0xf]
          %v434 = vld [vmem:[%s341 + $0x4] sm:$0xf]
          %v435 = vld [vmem:[%s341 + $0x8] sm:$0xf]
          %v436 = vld [vmem:[%s341 + $0xc] sm:$0xf]
          %v437 = vld [vmem:[%s341 + $0x10] sm:$0xf]
          %v438 = vld [vmem:[%s341 + $0x14] sm:$0xf]
          %v439 = vld [vmem:[%s341 + $0x18] sm:$0xf]
          %v440 = vld [vmem:[%s341 + $0x1c] sm:$0xf]
          %v441 = vld [vmem:[%s341 + $0x20] sm:$0xf]
          %v442 = vld [vmem:[%s341 + $0x24] sm:$0xf]
          %v443 = vld [vmem:[%s341 + $0x28] sm:$0xf]
          %v444 = vld [vmem:[%s341 + $0x2c] sm:$0xf]
          %v445 = vld [vmem:[%s341 + $0x30] sm:$0xf]
          %v446 = vld [vmem:[%s341 + $0x34] sm:$0xf]
          %v447 = vld [vmem:[%s341 + $0x38] sm:$0xf]
          %v448 = vld [vmem:[%s341 + $0x3c] sm:$0xf]
          %v465 = vunpack.c.l.b16 %v417
          %v466 = vunpack.c.l.b16 %v418
          %v467 = vunpack.c.l.b16 %v419
          %v468 = vunpack.c.l.b16 %v420
          %v469 = vunpack.c.l.b16 %v421
          %v470 = vunpack.c.l.b16 %v422
          %v471 = vunpack.c.l.b16 %v423
          %v472 = vunpack.c.l.b16 %v424
          %v473 = vunpack.c.l.b16 %v425
          %v474 = vunpack.c.l.b16 %v426
          %v475 = vunpack.c.l.b16 %v427
          %v476 = vunpack.c.l.b16 %v428
          %v477 = vunpack.c.l.b16 %v429
          %v478 = vunpack.c.l.b16 %v430
          %v479 = vunpack.c.l.b16 %v431
          %v480 = vunpack.c.l.b16 %v432
          %v481 = vpack.c.b16 %v466, %v465
          %v482 = vpack.c.b16 %v468, %v467
          %v483 = vpack.c.b16 %v470, %v469
          %v484 = vpack.c.b16 %v472, %v471
          %v485 = vpack.c.b16 %v474, %v473
          %v486 = vpack.c.b16 %v476, %v475
          %v487 = vpack.c.b16 %v478, %v477
          %v488 = vpack.c.b16 %v480, %v479
          %v513 = vunpack.c.l.b16 %v433
          %v514 = vunpack.c.l.b16 %v434
          %v515 = vunpack.c.l.b16 %v435
          %v516 = vunpack.c.l.b16 %v436
          %v517 = vunpack.c.l.b16 %v437
          %v518 = vunpack.c.l.b16 %v438
          %v519 = vunpack.c.l.b16 %v439
          %v520 = vunpack.c.l.b16 %v440
          %v521 = vunpack.c.l.b16 %v441
          %v522 = vunpack.c.l.b16 %v442
          %v523 = vunpack.c.l.b16 %v443
          %v524 = vunpack.c.l.b16 %v444
          %v525 = vunpack.c.l.b16 %v445
          %v526 = vunpack.c.l.b16 %v446
          %v527 = vunpack.c.l.b16 %v447
          %v528 = vunpack.c.l.b16 %v448
          %v529 = vpack.c.b16 %v514, %v513
          %v530 = vpack.c.b16 %v516, %v515
          %v531 = vpack.c.b16 %v518, %v517
          %v532 = vpack.c.b16 %v520, %v519
          %v533 = vpack.c.b16 %v522, %v521
          %v534 = vpack.c.b16 %v524, %v523
          %v535 = vpack.c.b16 %v526, %v525
          %v536 = vpack.c.b16 %v528, %v527
          %545 = vmatpush.bf16.msra.mxu0 %v536
          %546 = vmatpush.bf16.msra.mxu0 %v535
          %547 = vmatpush.bf16.msra.mxu0 %v534
          %548 = vmatpush.bf16.msra.mxu0 %v533
          %549 = vmatpush.bf16.msra.mxu0 %v532
          %550 = vmatpush.bf16.msra.mxu0 %v531
          %551 = vmatpush.bf16.msra.mxu0 %v530
          %552 = vmatpush.bf16.msra.mxu0 %v529
          %553 = vmatmul.bf16.gmra.mxu0 %v481
          %v554 = vpop.f32.mrf.mxu0
          %v555 = vadd.f32 0.0, %v554
          %v556 = vpop.f32.mrf.mxu0
          %v557 = vadd.f32 0.0, %v556
          %558 = vmatmul.bf16.gmra.mxu0 %v482
          %v559 = vpop.f32.mrf.mxu0
          %v560 = vadd.f32 0.0, %v559
          %v561 = vpop.f32.mrf.mxu0
          %v562 = vadd.f32 0.0, %v561
          %563 = vmatmul.bf16.gmra.mxu0 %v483
          %v564 = vpop.f32.mrf.mxu0
          %v565 = vadd.f32 0.0, %v564
          %v566 = vpop.f32.mrf.mxu0
          %v567 = vadd.f32 0.0, %v566
          %568 = vmatmul.bf16.gmra.mxu0 %v484
          %v569 = vpop.f32.mrf.mxu0
          %v570 = vadd.f32 0.0, %v569
          %v571 = vpop.f32.mrf.mxu0
          %v572 = vadd.f32 0.0, %v571
          %573 = vmatmul.bf16.gmra.mxu0 %v485
          %v574 = vpop.f32.mrf.mxu0
          %v575 = vadd.f32 0.0, %v574
          %v576 = vpop.f32.mrf.mxu0
          %v577 = vadd.f32 0.0, %v576
          %578 = vmatmul.bf16.gmra.mxu0 %v486
          %v579 = vpop.f32.mrf.mxu0
          %v580 = vadd.f32 0.0, %v579
          %v581 = vpop.f32.mrf.mxu0
          %v582 = vadd.f32 0.0, %v581
          %583 = vmatmul.bf16.gmra.mxu0 %v487
          %v584 = vpop.f32.mrf.mxu0
          %v585 = vadd.f32 0.0, %v584
          %v586 = vpop.f32.mrf.mxu0
          %v587 = vadd.f32 0.0, %v586
          %588 = vmatmul.bf16.gmra.mxu0 %v488
          %v589 = vpop.f32.mrf.mxu0
          %v590 = vadd.f32 0.0, %v589
          %v591 = vpop.f32.mrf.mxu0
          %v592 = vadd.f32 0.0, %v591
          %593 = vdwg.mxu0
          %v594 = vpack.c.bf16 %v555, %v555
          %v595 = vpack.c.bf16 %v557, %v557
          %v596 = vpack.c.bf16 %v560, %v560
          %v597 = vpack.c.bf16 %v562, %v562
          %v598 = vpack.c.bf16 %v565, %v565
          %v599 = vpack.c.bf16 %v567, %v567
          %v600 = vpack.c.bf16 %v570, %v570
          %v601 = vpack.c.bf16 %v572, %v572
          %v602 = vpack.c.bf16 %v575, %v575
          %v603 = vpack.c.bf16 %v577, %v577
          %v604 = vpack.c.bf16 %v580, %v580
          %v605 = vpack.c.bf16 %v582, %v582
          %v606 = vpack.c.bf16 %v585, %v585
          %v607 = vpack.c.bf16 %v587, %v587
          %v608 = vpack.c.bf16 %v590, %v590
          %v609 = vpack.c.bf16 %v592, %v592
          %610 = vst [vmem:[#allocation2] sm:$0xf] %v594
          %611 = vst [vmem:[#allocation2 + $0x4] sm:$0xf] %v595
          %612 = vst [vmem:[#allocation2 + $0x8] sm:$0xf] %v596
          %613 = vst [vmem:[#allocation2 + $0xc] sm:$0xf] %v597
          %614 = vst [vmem:[#allocation2 + $0x10] sm:$0xf] %v598
          %615 = vst [vmem:[#allocation2 + $0x14] sm:$0xf] %v599
          %616 = vst [vmem:[#allocation2 + $0x18] sm:$0xf] %v600
          %617 = vst [vmem:[#allocation2 + $0x1c] sm:$0xf] %v601
          %618 = vst [vmem:[#allocation2 + $0x20] sm:$0xf] %v602
          %619 = vst [vmem:[#allocation2 + $0x24] sm:$0xf] %v603
          %620 = vst [vmem:[#allocation2 + $0x28] sm:$0xf] %v604
          %621 = vst [vmem:[#allocation2 + $0x2c] sm:$0xf] %v605
          %622 = vst [vmem:[#allocation2 + $0x30] sm:$0xf] %v606
          %623 = vst [vmem:[#allocation2 + $0x34] sm:$0xf] %v607
          %624 = vst [vmem:[#allocation2 + $0x38] sm:$0xf] %v608
          %625 = vst [vmem:[#allocation2 + $0x3c] sm:$0xf] %v609
          %v626 = vld [vmem:[%s350] sm:$0x1]
          %627 = vmatpush.xpose.msra.mxu0 %v592
          %628 = vmatpush.xpose.msra.mxu0 %v590
          %629 = vmatpush.xpose.msra.mxu0 %v587
          %630 = vmatpush.xpose.msra.mxu0 %v585
          %631 = vmatpush.xpose.msra.mxu0 %v582
          %632 = vmatpush.xpose.msra.mxu0 %v580
          %633 = vmatpush.xpose.msra.mxu0 %v577
          %634 = vmatpush.xpose.msra.mxu0 %v575
          %635 = vmatpush.xpose.msra.mxu0 %v572
          %636 = vmatpush.xpose.msra.mxu0 %v570
          %637 = vmatpush.xpose.msra.mxu0 %v567
          %638 = vmatpush.xpose.msra.mxu0 %v565
          %639 = vmatpush.xpose.msra.mxu0 %v562
          %640 = vmatpush.xpose.msra.mxu0 %v560
          %641 = vmatpush.xpose.msra.mxu0 %v557
          %642 = vmatpush.xpose.msra.mxu0 %v555
          %643 = vmatmul.f32.gmra.mxu0 %v626
          %v644 = vpop.f32.mrf.mxu0
          %v645 = vadd.f32 0.0, %v644
          %646 = vdwg.mxu0
          %647 = vst [vmem:[#allocation4] sm:$0x1] %v645
          %v648 = vld [vmem:[%s407] sm:$0x1]
          %v650 = vperm.slane %v648, 0
          %v652 = vmul.f32 %v555, %v650
          %v653 = vmul.f32 %v557, %v650
          %v654 = vmul.f32 %v560, %v650
          %v655 = vmul.f32 %v562, %v650
          %v656 = vmul.f32 %v565, %v650
          %v657 = vmul.f32 %v567, %v650
          %v658 = vmul.f32 %v570, %v650
          %v659 = vmul.f32 %v572, %v650
          %v660 = vmul.f32 %v575, %v650
          %v661 = vmul.f32 %v577, %v650
          %v662 = vmul.f32 %v580, %v650
          %v663 = vmul.f32 %v582, %v650
          %v664 = vmul.f32 %v585, %v650
          %v665 = vmul.f32 %v587, %v650
          %v666 = vmul.f32 %v590, %v650
          %v667 = vmul.f32 %v592, %v650
          %668 = vadd.xlane.f32.xlu0 %v652
          %v669 = vpop.xlane.xlu0 %668
          %670 = vadd.xlane.f32.xlu0 %v653
          %v671 = vpop.xlane.xlu0 %670
          %672 = vadd.xlane.f32.xlu0 %v654
          %v673 = vpop.xlane.xlu0 %672
          %674 = vadd.xlane.f32.xlu0 %v655
          %v675 = vpop.xlane.xlu0 %674
          %676 = vadd.xlane.f32.xlu0 %v656
          %v677 = vpop.xlane.xlu0 %676
          %678 = vadd.xlane.f32.xlu0 %v657
          %v679 = vpop.xlane.xlu0 %678
          %680 = vadd.xlane.f32.xlu0 %v658
          %v681 = vpop.xlane.xlu0 %680
          %682 = vadd.xlane.f32.xlu0 %v659
          %v683 = vpop.xlane.xlu0 %682
          %684 = vadd.xlane.f32.xlu0 %v660
          %v685 = vpop.xlane.xlu0 %684
          %686 = vadd.xlane.f32.xlu0 %v661
          %v687 = vpop.xlane.xlu0 %686
          %688 = vadd.xlane.f32.xlu0 %v662
          %v689 = vpop.xlane.xlu0 %688
          %690 = vadd.xlane.f32.xlu0 %v663
          %v691 = vpop.xlane.xlu0 %690
          %692 = vadd.xlane.f32.xlu0 %v664
          %v693 = vpop.xlane.xlu0 %692
          %694 = vadd.xlane.f32.xlu0 %v665
          %v695 = vpop.xlane.xlu0 %694
          %696 = vadd.xlane.f32.xlu0 %v666
          %v697 = vpop.xlane.xlu0 %696
          %698 = vadd.xlane.f32.xlu0 %v667
          %v699 = vpop.xlane.xlu0 %698
          %vm700 = vcmask 7168
          %701 = vst.msk [vmem:[#allocation5] sm:$0xff] %vm700, %v669
          %702 = vst.msk [vmem:[#allocation5 + $0x8] sm:$0xff] %vm700, %v671
          %703 = vst.msk [vmem:[#allocation5 + $0x10] sm:$0xff] %vm700, %v673
          %704 = vst.msk [vmem:[#allocation5 + $0x18] sm:$0xff] %vm700, %v675
          %705 = vst.msk [vmem:[#allocation5 + $0x20] sm:$0xff] %vm700, %v677
          %706 = vst.msk [vmem:[#allocation5 + $0x28] sm:$0xff] %vm700, %v679
          %707 = vst.msk [vmem:[#allocation5 + $0x30] sm:$0xff] %vm700, %v681
          %708 = vst.msk [vmem:[#allocation5 + $0x38] sm:$0xff] %vm700, %v683
          %709 = vst.msk [vmem:[#allocation5 + $0x40] sm:$0xff] %vm700, %v685
          %710 = vst.msk [vmem:[#allocation5 + $0x48] sm:$0xff] %vm700, %v687
          %711 = vst.msk [vmem:[#allocation5 + $0x50] sm:$0xff] %vm700, %v689
          %712 = vst.msk [vmem:[#allocation5 + $0x58] sm:$0xff] %vm700, %v691
          %713 = vst.msk [vmem:[#allocation5 + $0x60] sm:$0xff] %vm700, %v693
          %714 = vst.msk [vmem:[#allocation5 + $0x68] sm:$0xff] %vm700, %v695
          %715 = vst.msk [vmem:[#allocation5 + $0x70] sm:$0xff] %vm700, %v697
          %716 = vst.msk [vmem:[#allocation5 + $0x78] sm:$0xff] %vm700, %v699
        $region68: #{tpu_custom_call.1} parent=43 // pred_fallthru
          _
        %p717 = scmp.eq.s32.totalorder %s31, 1
        %p718 = pnand %p717, %p412
        %p719 = pneg %p718
        // Predicated region
        $region69: #{tpu_custom_call.1} parent=43 // pred_check
          _
        $region70: #{tpu_custom_call.1} parent=43 // pred_check_branch
          %721 = sbr.rel (%p718) target = $region72
        $region71: #{tpu_custom_call.1} parent=43 // pred_region
          %v722 = vld [vmem:[#allocation3] sm:$0xf]
          %v723 = vld [vmem:[#allocation3 + $0x4] sm:$0xf]
          %v724 = vld [vmem:[#allocation3 + $0x8] sm:$0xf]
          %v725 = vld [vmem:[#allocation3 + $0xc] sm:$0xf]
          %v726 = vld [vmem:[#allocation3 + $0x10] sm:$0xf]
          %v727 = vld [vmem:[#allocation3 + $0x14] sm:$0xf]
          %v728 = vld [vmem:[#allocation3 + $0x18] sm:$0xf]
          %v729 = vld [vmem:[#allocation3 + $0x1c] sm:$0xf]
          %v730 = vld [vmem:[#allocation3 + $0x20] sm:$0xf]
          %v731 = vld [vmem:[#allocation3 + $0x24] sm:$0xf]
          %v732 = vld [vmem:[#allocation3 + $0x28] sm:$0xf]
          %v733 = vld [vmem:[#allocation3 + $0x2c] sm:$0xf]
          %v734 = vld [vmem:[#allocation3 + $0x30] sm:$0xf]
          %v735 = vld [vmem:[#allocation3 + $0x34] sm:$0xf]
          %v736 = vld [vmem:[#allocation3 + $0x38] sm:$0xf]
          %v737 = vld [vmem:[#allocation3 + $0x3c] sm:$0xf]
          %v738 = vld [vmem:[%s341] sm:$0xf]
          %v739 = vld [vmem:[%s341 + $0x4] sm:$0xf]
          %v740 = vld [vmem:[%s341 + $0x8] sm:$0xf]
          %v741 = vld [vmem:[%s341 + $0xc] sm:$0xf]
          %v742 = vld [vmem:[%s341 + $0x10] sm:$0xf]
          %v743 = vld [vmem:[%s341 + $0x14] sm:$0xf]
          %v744 = vld [vmem:[%s341 + $0x18] sm:$0xf]
          %v745 = vld [vmem:[%s341 + $0x1c] sm:$0xf]
          %v746 = vld [vmem:[%s341 + $0x20] sm:$0xf]
          %v747 = vld [vmem:[%s341 + $0x24] sm:$0xf]
          %v748 = vld [vmem:[%s341 + $0x28] sm:$0xf]
          %v749 = vld [vmem:[%s341 + $0x2c] sm:$0xf]
          %v750 = vld [vmem:[%s341 + $0x30] sm:$0xf]
          %v751 = vld [vmem:[%s341 + $0x34] sm:$0xf]
          %v752 = vld [vmem:[%s341 + $0x38] sm:$0xf]
          %v753 = vld [vmem:[%s341 + $0x3c] sm:$0xf]
          %v770 = vunpack.c.l.b16 %v722
          %v771 = vunpack.c.l.b16 %v723
          %v772 = vunpack.c.l.b16 %v724
          %v773 = vunpack.c.l.b16 %v725
          %v774 = vunpack.c.l.b16 %v726
          %v775 = vunpack.c.l.b16 %v727
          %v776 = vunpack.c.l.b16 %v728
          %v777 = vunpack.c.l.b16 %v729
          %v778 = vunpack.c.l.b16 %v730
          %v779 = vunpack.c.l.b16 %v731
          %v780 = vunpack.c.l.b16 %v732
          %v781 = vunpack.c.l.b16 %v733
          %v782 = vunpack.c.l.b16 %v734
          %v783 = vunpack.c.l.b16 %v735
          %v784 = vunpack.c.l.b16 %v736
          %v785 = vunpack.c.l.b16 %v737
          %v786 = vpack.c.b16 %v771, %v770
          %v787 = vpack.c.b16 %v773, %v772
          %v788 = vpack.c.b16 %v775, %v774
          %v789 = vpack.c.b16 %v777, %v776
          %v790 = vpack.c.b16 %v779, %v778
          %v791 = vpack.c.b16 %v781, %v780
          %v792 = vpack.c.b16 %v783, %v782
          %v793 = vpack.c.b16 %v785, %v784
          %v818 = vunpack.c.l.b16 %v738
          %v819 = vunpack.c.l.b16 %v739
          %v820 = vunpack.c.l.b16 %v740
          %v821 = vunpack.c.l.b16 %v741
          %v822 = vunpack.c.l.b16 %v742
          %v823 = vunpack.c.l.b16 %v743
          %v824 = vunpack.c.l.b16 %v744
          %v825 = vunpack.c.l.b16 %v745
          %v826 = vunpack.c.l.b16 %v746
          %v827 = vunpack.c.l.b16 %v747
          %v828 = vunpack.c.l.b16 %v748
          %v829 = vunpack.c.l.b16 %v749
          %v830 = vunpack.c.l.b16 %v750
          %v831 = vunpack.c.l.b16 %v751
          %v832 = vunpack.c.l.b16 %v752
          %v833 = vunpack.c.l.b16 %v753
          %v834 = vpack.c.b16 %v819, %v818
          %v835 = vpack.c.b16 %v821, %v820
          %v836 = vpack.c.b16 %v823, %v822
          %v837 = vpack.c.b16 %v825, %v824
          %v838 = vpack.c.b16 %v827, %v826
          %v839 = vpack.c.b16 %v829, %v828
          %v840 = vpack.c.b16 %v831, %v830
          %v841 = vpack.c.b16 %v833, %v832
          %850 = vmatpush.bf16.msra.mxu0 %v841
          %851 = vmatpush.bf16.msra.mxu0 %v840
          %852 = vmatpush.bf16.msra.mxu0 %v839
          %853 = vmatpush.bf16.msra.mxu0 %v838
          %854 = vmatpush.bf16.msra.mxu0 %v837
          %855 = vmatpush.bf16.msra.mxu0 %v836
          %856 = vmatpush.bf16.msra.mxu0 %v835
          %857 = vmatpush.bf16.msra.mxu0 %v834
          %858 = vmatmul.bf16.gmra.mxu0 %v786
          %v859 = vpop.f32.mrf.mxu0
          %v860 = vadd.f32 0.0, %v859
          %v861 = vpop.f32.mrf.mxu0
          %v862 = vadd.f32 0.0, %v861
          %863 = vmatmul.bf16.gmra.mxu0 %v787
          %v864 = vpop.f32.mrf.mxu0
          %v865 = vadd.f32 0.0, %v864
          %v866 = vpop.f32.mrf.mxu0
          %v867 = vadd.f32 0.0, %v866
          %868 = vmatmul.bf16.gmra.mxu0 %v788
          %v869 = vpop.f32.mrf.mxu0
          %v870 = vadd.f32 0.0, %v869
          %v871 = vpop.f32.mrf.mxu0
          %v872 = vadd.f32 0.0, %v871
          %873 = vmatmul.bf16.gmra.mxu0 %v789
          %v874 = vpop.f32.mrf.mxu0
          %v875 = vadd.f32 0.0, %v874
          %v876 = vpop.f32.mrf.mxu0
          %v877 = vadd.f32 0.0, %v876
          %878 = vmatmul.bf16.gmra.mxu0 %v790
          %v879 = vpop.f32.mrf.mxu0
          %v880 = vadd.f32 0.0, %v879
          %v881 = vpop.f32.mrf.mxu0
          %v882 = vadd.f32 0.0, %v881
          %883 = vmatmul.bf16.gmra.mxu0 %v791
          %v884 = vpop.f32.mrf.mxu0
          %v885 = vadd.f32 0.0, %v884
          %v886 = vpop.f32.mrf.mxu0
          %v887 = vadd.f32 0.0, %v886
          %888 = vmatmul.bf16.gmra.mxu0 %v792
          %v889 = vpop.f32.mrf.mxu0
          %v890 = vadd.f32 0.0, %v889
          %v891 = vpop.f32.mrf.mxu0
          %v892 = vadd.f32 0.0, %v891
          %893 = vmatmul.bf16.gmra.mxu0 %v793
          %v894 = vpop.f32.mrf.mxu0
          %v895 = vadd.f32 0.0, %v894
          %v896 = vpop.f32.mrf.mxu0
          %v897 = vadd.f32 0.0, %v896
          %898 = vdwg.mxu0
          %v899 = vpack.c.bf16 %v860, %v860
          %v900 = vpack.c.bf16 %v862, %v862
          %v901 = vpack.c.bf16 %v865, %v865
          %v902 = vpack.c.bf16 %v867, %v867
          %v903 = vpack.c.bf16 %v870, %v870
          %v904 = vpack.c.bf16 %v872, %v872
          %v905 = vpack.c.bf16 %v875, %v875
          %v906 = vpack.c.bf16 %v877, %v877
          %v907 = vpack.c.bf16 %v880, %v880
          %v908 = vpack.c.bf16 %v882, %v882
          %v909 = vpack.c.bf16 %v885, %v885
          %v910 = vpack.c.bf16 %v887, %v887
          %v911 = vpack.c.bf16 %v890, %v890
          %v912 = vpack.c.bf16 %v892, %v892
          %v913 = vpack.c.bf16 %v895, %v895
          %v914 = vpack.c.bf16 %v897, %v897
          %915 = vst [vmem:[#allocation2] sm:$0xf] %v899
          %916 = vst [vmem:[#allocation2 + $0x4] sm:$0xf] %v900
          %917 = vst [vmem:[#allocation2 + $0x8] sm:$0xf] %v901
          %918 = vst [vmem:[#allocation2 + $0xc] sm:$0xf] %v902
          %919 = vst [vmem:[#allocation2 + $0x10] sm:$0xf] %v903
          %920 = vst [vmem:[#allocation2 + $0x14] sm:$0xf] %v904
          %921 = vst [vmem:[#allocation2 + $0x18] sm:$0xf] %v905
          %922 = vst [vmem:[#allocation2 + $0x1c] sm:$0xf] %v906
          %923 = vst [vmem:[#allocation2 + $0x20] sm:$0xf] %v907
          %924 = vst [vmem:[#allocation2 + $0x24] sm:$0xf] %v908
          %925 = vst [vmem:[#allocation2 + $0x28] sm:$0xf] %v909
          %926 = vst [vmem:[#allocation2 + $0x2c] sm:$0xf] %v910
          %927 = vst [vmem:[#allocation2 + $0x30] sm:$0xf] %v911
          %928 = vst [vmem:[#allocation2 + $0x34] sm:$0xf] %v912
          %929 = vst [vmem:[#allocation2 + $0x38] sm:$0xf] %v913
          %930 = vst [vmem:[#allocation2 + $0x3c] sm:$0xf] %v914
          %v931 = vld [vmem:[%s350] sm:$0x1]
          %932 = vmatpush.xpose.msra.mxu0 %v897
          %933 = vmatpush.xpose.msra.mxu0 %v895
          %934 = vmatpush.xpose.msra.mxu0 %v892
          %935 = vmatpush.xpose.msra.mxu0 %v890
          %936 = vmatpush.xpose.msra.mxu0 %v887
          %937 = vmatpush.xpose.msra.mxu0 %v885
          %938 = vmatpush.xpose.msra.mxu0 %v882
          %939 = vmatpush.xpose.msra.mxu0 %v880
          %940 = vmatpush.xpose.msra.mxu0 %v877
          %941 = vmatpush.xpose.msra.mxu0 %v875
          %942 = vmatpush.xpose.msra.mxu0 %v872
          %943 = vmatpush.xpose.msra.mxu0 %v870
          %944 = vmatpush.xpose.msra.mxu0 %v867
          %945 = vmatpush.xpose.msra.mxu0 %v865
          %946 = vmatpush.xpose.msra.mxu0 %v862
          %947 = vmatpush.xpose.msra.mxu0 %v860
          %948 = vmatmul.f32.gmra.mxu0 %v931
          %v949 = vpop.f32.mrf.mxu0
          %v950 = vadd.f32 0.0, %v949
          %951 = vdwg.mxu0
          %952 = vst [vmem:[#allocation4] sm:$0x1] %v950
          %v953 = vld [vmem:[%s407] sm:$0x1]
          %v955 = vperm.slane %v953, 0
          %v957 = vmul.f32 %v860, %v955
          %v958 = vmul.f32 %v862, %v955
          %v959 = vmul.f32 %v865, %v955
          %v960 = vmul.f32 %v867, %v955
          %v961 = vmul.f32 %v870, %v955
          %v962 = vmul.f32 %v872, %v955
          %v963 = vmul.f32 %v875, %v955
          %v964 = vmul.f32 %v877, %v955
          %v965 = vmul.f32 %v880, %v955
          %v966 = vmul.f32 %v882, %v955
          %v967 = vmul.f32 %v885, %v955
          %v968 = vmul.f32 %v887, %v955
          %v969 = vmul.f32 %v890, %v955
          %v970 = vmul.f32 %v892, %v955
          %v971 = vmul.f32 %v895, %v955
          %v972 = vmul.f32 %v897, %v955
          %973 = vadd.xlane.f32.xlu0 %v957
          %v974 = vpop.xlane.xlu0 %973
          %975 = vadd.xlane.f32.xlu0 %v958
          %v976 = vpop.xlane.xlu0 %975
          %977 = vadd.xlane.f32.xlu0 %v959
          %v978 = vpop.xlane.xlu0 %977
          %979 = vadd.xlane.f32.xlu0 %v960
          %v980 = vpop.xlane.xlu0 %979
          %981 = vadd.xlane.f32.xlu0 %v961
          %v982 = vpop.xlane.xlu0 %981
          %983 = vadd.xlane.f32.xlu0 %v962
          %v984 = vpop.xlane.xlu0 %983
          %985 = vadd.xlane.f32.xlu0 %v963
          %v986 = vpop.xlane.xlu0 %985
          %987 = vadd.xlane.f32.xlu0 %v964
          %v988 = vpop.xlane.xlu0 %987
          %989 = vadd.xlane.f32.xlu0 %v965
          %v990 = vpop.xlane.xlu0 %989
          %991 = vadd.xlane.f32.xlu0 %v966
          %v992 = vpop.xlane.xlu0 %991
          %993 = vadd.xlane.f32.xlu0 %v967
          %v994 = vpop.xlane.xlu0 %993
          %995 = vadd.xlane.f32.xlu0 %v968
          %v996 = vpop.xlane.xlu0 %995
          %997 = vadd.xlane.f32.xlu0 %v969
          %v998 = vpop.xlane.xlu0 %997
          %999 = vadd.xlane.f32.xlu0 %v970
          %v1000 = vpop.xlane.xlu0 %999
          %1001 = vadd.xlane.f32.xlu0 %v971
          %v1002 = vpop.xlane.xlu0 %1001
          %1003 = vadd.xlane.f32.xlu0 %v972
          %v1004 = vpop.xlane.xlu0 %1003
          %vm1005 = vcmask 7168
          %1006 = vst.msk [vmem:[#allocation5] sm:$0xff] %vm1005, %v974
          %1007 = vst.msk [vmem:[#allocation5 + $0x8] sm:$0xff] %vm1005, %v976
          %1008 = vst.msk [vmem:[#allocation5 + $0x10] sm:$0xff] %vm1005, %v978
          %1009 = vst.msk [vmem:[#allocation5 + $0x18] sm:$0xff] %vm1005, %v980
          %1010 = vst.msk [vmem:[#allocation5 + $0x20] sm:$0xff] %vm1005, %v982
          %1011 = vst.msk [vmem:[#allocation5 + $0x28] sm:$0xff] %vm1005, %v984
          %1012 = vst.msk [vmem:[#allocation5 + $0x30] sm:$0xff] %vm1005, %v986
          %1013 = vst.msk [vmem:[#allocation5 + $0x38] sm:$0xff] %vm1005, %v988
          %1014 = vst.msk [vmem:[#allocation5 + $0x40] sm:$0xff] %vm1005, %v990
          %1015 = vst.msk [vmem:[#allocation5 + $0x48] sm:$0xff] %vm1005, %v992
          %1016 = vst.msk [vmem:[#allocation5 + $0x50] sm:$0xff] %vm1005, %v994
          %1017 = vst.msk [vmem:[#allocation5 + $0x58] sm:$0xff] %vm1005, %v996
          %1018 = vst.msk [vmem:[#allocation5 + $0x60] sm:$0xff] %vm1005, %v998
          %1019 = vst.msk [vmem:[#allocation5 + $0x68] sm:$0xff] %vm1005, %v1000
          %1020 = vst.msk [vmem:[#allocation5 + $0x70] sm:$0xff] %vm1005, %v1002
          %1021 = vst.msk [vmem:[#allocation5 + $0x78] sm:$0xff] %vm1005, %v1004
        $region72: #{tpu_custom_call.1} parent=43 // pred_fallthru
          _
        %s1022 = smul.u32 %s32, 128
        %s1023 = scalar_lea.vmem [#allocation5], %s1022
        %v1024 = vld [vmem:[%s1023] sm:$0xff]
        %v1025 = vld [vmem:[%s1023 + $0x8] sm:$0xff]
        %v1026 = vld [vmem:[%s1023 + $0x10] sm:$0xff]
        %v1027 = vld [vmem:[%s1023 + $0x18] sm:$0xff]
        %v1028 = vld [vmem:[%s1023 + $0x20] sm:$0xff]
        %v1029 = vld [vmem:[%s1023 + $0x28] sm:$0xff]
        %v1030 = vld [vmem:[%s1023 + $0x30] sm:$0xff]
        %v1031 = vld [vmem:[%s1023 + $0x38] sm:$0xff]
        %v1032 = vld [vmem:[%s1023 + $0x40] sm:$0xff]
        %v1033 = vld [vmem:[%s1023 + $0x48] sm:$0xff]
        %v1034 = vld [vmem:[%s1023 + $0x50] sm:$0xff]
        %v1035 = vld [vmem:[%s1023 + $0x58] sm:$0xff]
        %v1036 = vld [vmem:[%s1023 + $0x60] sm:$0xff]
        %v1037 = vld [vmem:[%s1023 + $0x68] sm:$0xff]
        %v1038 = vld [vmem:[%s1023 + $0x70] sm:$0xff]
        %v1039 = vld [vmem:[%s1023 + $0x78] sm:$0xff]
        %v1040 = vld [vmem:[#allocation14] sm:$0xff]
        %v1041 = vld [vmem:[#allocation14 + $0x8] sm:$0xff]
        %v1042 = vld [vmem:[#allocation14 + $0x10] sm:$0xff]
        %v1043 = vld [vmem:[#allocation14 + $0x18] sm:$0xff]
        %v1044 = vunpack.c.0.s8 %v1040
        %v1045 = vunpack.c.1.s8 %v1040
        %v1046 = vunpack.c.2.s8 %v1040
        %v1047 = vunpack.c.3.s8 %v1040
        %v1048 = vunpack.c.0.s8 %v1041
        %v1049 = vunpack.c.1.s8 %v1041
        %v1050 = vunpack.c.2.s8 %v1041
        %v1051 = vunpack.c.3.s8 %v1041
        %v1052 = vunpack.c.0.s8 %v1042
        %v1053 = vunpack.c.1.s8 %v1042
        %v1054 = vunpack.c.2.s8 %v1042
        %v1055 = vunpack.c.3.s8 %v1042
        %v1056 = vunpack.c.0.s8 %v1043
        %v1057 = vunpack.c.1.s8 %v1043
        %v1058 = vunpack.c.2.s8 %v1043
        %v1059 = vunpack.c.3.s8 %v1043
        %v1060 = vcvt.s32.f32 %v1044
        %v1061 = vcvt.s32.f32 %v1045
        %v1062 = vcvt.s32.f32 %v1046
        %v1063 = vcvt.s32.f32 %v1047
        %v1064 = vcvt.s32.f32 %v1048
        %v1065 = vcvt.s32.f32 %v1049
        %v1066 = vcvt.s32.f32 %v1050
        %v1067 = vcvt.s32.f32 %v1051
        %v1068 = vcvt.s32.f32 %v1052
        %v1069 = vcvt.s32.f32 %v1053
        %v1070 = vcvt.s32.f32 %v1054
        %v1071 = vcvt.s32.f32 %v1055
        %v1072 = vcvt.s32.f32 %v1056
        %v1073 = vcvt.s32.f32 %v1057
        %v1074 = vcvt.s32.f32 %v1058
        %v1075 = vcvt.s32.f32 %v1059
        %v1076 = vld [vmem:[#allocation4] sm:$0x1]
        %1078 = vset.pattern.permute.xlu0 0
        %1079 = vperm.xlu0 %1078, %v1024
        %v1080 = vpop.permute.xlu0 %1079
        %1083 = vset.pattern.permute.xlu0 0
        %1084 = vperm.xlu0 %1083, %v1025
        %v1085 = vpop.permute.xlu0 %1084
        %1088 = vset.pattern.permute.xlu0 0
        %1089 = vperm.xlu0 %1088, %v1026
        %v1090 = vpop.permute.xlu0 %1089
        %1093 = vset.pattern.permute.xlu0 0
        %1094 = vperm.xlu0 %1093, %v1027
        %v1095 = vpop.permute.xlu0 %1094
        %1098 = vset.pattern.permute.xlu0 0
        %1099 = vperm.xlu0 %1098, %v1028
        %v1100 = vpop.permute.xlu0 %1099
        %1103 = vset.pattern.permute.xlu0 0
        %1104 = vperm.xlu0 %1103, %v1029
        %v1105 = vpop.permute.xlu0 %1104
        %1108 = vset.pattern.permute.xlu0 0
        %1109 = vperm.xlu0 %1108, %v1030
        %v1110 = vpop.permute.xlu0 %1109
        %1113 = vset.pattern.permute.xlu0 0
        %1114 = vperm.xlu0 %1113, %v1031
        %v1115 = vpop.permute.xlu0 %1114
        %1118 = vset.pattern.permute.xlu0 0
        %1119 = vperm.xlu0 %1118, %v1032
        %v1120 = vpop.permute.xlu0 %1119
        %1123 = vset.pattern.permute.xlu0 0
        %1124 = vperm.xlu0 %1123, %v1033
        %v1125 = vpop.permute.xlu0 %1124
        %1128 = vset.pattern.permute.xlu0 0
        %1129 = vperm.xlu0 %1128, %v1034
        %v1130 = vpop.permute.xlu0 %1129
        %1133 = vset.pattern.permute.xlu0 0
        %1134 = vperm.xlu0 %1133, %v1035
        %v1135 = vpop.permute.xlu0 %1134
        %1138 = vset.pattern.permute.xlu0 0
        %1139 = vperm.xlu0 %1138, %v1036
        %v1140 = vpop.permute.xlu0 %1139
        %1143 = vset.pattern.permute.xlu0 0
        %1144 = vperm.xlu0 %1143, %v1037
        %v1145 = vpop.permute.xlu0 %1144
        %1148 = vset.pattern.permute.xlu0 0
        %1149 = vperm.xlu0 %1148, %v1038
        %v1150 = vpop.permute.xlu0 %1149
        %1153 = vset.pattern.permute.xlu0 0
        %1154 = vperm.xlu0 %1153, %v1039
        %v1155 = vpop.permute.xlu0 %1154
        %v1158 = vperm.slane %v1076, 0
        %v1160 = vadd.f32 %v1080, %v1158
        %v1161 = vadd.f32 %v1085, %v1158
        %v1162 = vadd.f32 %v1090, %v1158
        %v1163 = vadd.f32 %v1095, %v1158
        %v1164 = vadd.f32 %v1100, %v1158
        %v1165 = vadd.f32 %v1105, %v1158
        %v1166 = vadd.f32 %v1110, %v1158
        %v1167 = vadd.f32 %v1115, %v1158
        %v1168 = vadd.f32 %v1120, %v1158
        %v1169 = vadd.f32 %v1125, %v1158
        %v1170 = vadd.f32 %v1130, %v1158
        %v1171 = vadd.f32 %v1135, %v1158
        %v1172 = vadd.f32 %v1140, %v1158
        %v1173 = vadd.f32 %v1145, %v1158
        %v1174 = vadd.f32 %v1150, %v1158
        %v1175 = vadd.f32 %v1155, %v1158
        %vm1176 = vcmp.gt.f32.partialorder %v1160, 0.0
        %vm1177 = vcmp.gt.f32.partialorder %v1161, 0.0
        %vm1178 = vcmp.gt.f32.partialorder %v1162, 0.0
        %vm1179 = vcmp.gt.f32.partialorder %v1163, 0.0
        %vm1180 = vcmp.gt.f32.partialorder %v1164, 0.0
        %vm1181 = vcmp.gt.f32.partialorder %v1165, 0.0
        %vm1182 = vcmp.gt.f32.partialorder %v1166, 0.0
        %vm1183 = vcmp.gt.f32.partialorder %v1167, 0.0
        %vm1184 = vcmp.gt.f32.partialorder %v1168, 0.0
        %vm1185 = vcmp.gt.f32.partialorder %v1169, 0.0
        %vm1186 = vcmp.gt.f32.partialorder %v1170, 0.0
        %vm1187 = vcmp.gt.f32.partialorder %v1171, 0.0
        %vm1188 = vcmp.gt.f32.partialorder %v1172, 0.0
        %vm1189 = vcmp.gt.f32.partialorder %v1173, 0.0
        %vm1190 = vcmp.gt.f32.partialorder %v1174, 0.0
        %vm1191 = vcmp.gt.f32.partialorder %v1175, 0.0
        %v1192 = vmul.f32 %v1160, 0.2
        %v1193 = vmul.f32 %v1161, 0.2
        %v1194 = vmul.f32 %v1162, 0.2
        %v1195 = vmul.f32 %v1163, 0.2
        %v1196 = vmul.f32 %v1164, 0.2
        %v1197 = vmul.f32 %v1165, 0.2
        %v1198 = vmul.f32 %v1166, 0.2
        %v1199 = vmul.f32 %v1167, 0.2
        %v1200 = vmul.f32 %v1168, 0.2
        %v1201 = vmul.f32 %v1169, 0.2
        %v1202 = vmul.f32 %v1170, 0.2
        %v1203 = vmul.f32 %v1171, 0.2
        %v1204 = vmul.f32 %v1172, 0.2
        %v1205 = vmul.f32 %v1173, 0.2
        %v1206 = vmul.f32 %v1174, 0.2
        %v1207 = vmul.f32 %v1175, 0.2
        %v1208 = vsel %vm1176, %v1160, %v1192
        %v1209 = vsel %vm1177, %v1161, %v1193
        %v1210 = vsel %vm1178, %v1162, %v1194
        %v1211 = vsel %vm1179, %v1163, %v1195
        %v1212 = vsel %vm1180, %v1164, %v1196
        %v1213 = vsel %vm1181, %v1165, %v1197
        %v1214 = vsel %vm1182, %v1166, %v1198
        %v1215 = vsel %vm1183, %v1167, %v1199
        %v1216 = vsel %vm1184, %v1168, %v1200
        %v1217 = vsel %vm1185, %v1169, %v1201
        %v1218 = vsel %vm1186, %v1170, %v1202
        %v1219 = vsel %vm1187, %v1171, %v1203
        %v1220 = vsel %vm1188, %v1172, %v1204
        %v1221 = vsel %vm1189, %v1173, %v1205
        %v1222 = vsel %vm1190, %v1174, %v1206
        %v1223 = vsel %vm1191, %v1175, %v1207
        %v1224 = vsub.f32 %v1060, 1.0
        %v1225 = vsub.f32 %v1061, 1.0
        %v1226 = vsub.f32 %v1062, 1.0
        %v1227 = vsub.f32 %v1063, 1.0
        %v1228 = vsub.f32 %v1064, 1.0
        %v1229 = vsub.f32 %v1065, 1.0
        %v1230 = vsub.f32 %v1066, 1.0
        %v1231 = vsub.f32 %v1067, 1.0
        %v1232 = vsub.f32 %v1068, 1.0
        %v1233 = vsub.f32 %v1069, 1.0
        %v1234 = vsub.f32 %v1070, 1.0
        %v1235 = vsub.f32 %v1071, 1.0
        %v1236 = vsub.f32 %v1072, 1.0
        %v1237 = vsub.f32 %v1073, 1.0
        %v1238 = vsub.f32 %v1074, 1.0
        %v1239 = vsub.f32 %v1075, 1.0
        %v1240 = vmul.f32 %v1224, 1e+30
        %v1241 = vmul.f32 %v1225, 1e+30
        %v1242 = vmul.f32 %v1226, 1e+30
        %v1243 = vmul.f32 %v1227, 1e+30
        %v1244 = vmul.f32 %v1228, 1e+30
        %v1245 = vmul.f32 %v1229, 1e+30
        %v1246 = vmul.f32 %v1230, 1e+30
        %v1247 = vmul.f32 %v1231, 1e+30
        %v1248 = vmul.f32 %v1232, 1e+30
        %v1249 = vmul.f32 %v1233, 1e+30
        %v1250 = vmul.f32 %v1234, 1e+30
        %v1251 = vmul.f32 %v1235, 1e+30
        %v1252 = vmul.f32 %v1236, 1e+30
        %v1253 = vmul.f32 %v1237, 1e+30
        %v1254 = vmul.f32 %v1238, 1e+30
        %v1255 = vmul.f32 %v1239, 1e+30
        %v1256 = vadd.f32 %v1208, %v1240
        %v1257 = vadd.f32 %v1209, %v1241
        %v1258 = vadd.f32 %v1210, %v1242
        %v1259 = vadd.f32 %v1211, %v1243
        %v1260 = vadd.f32 %v1212, %v1244
        %v1261 = vadd.f32 %v1213, %v1245
        %v1262 = vadd.f32 %v1214, %v1246
        %v1263 = vadd.f32 %v1215, %v1247
        %v1264 = vadd.f32 %v1216, %v1248
        %v1265 = vadd.f32 %v1217, %v1249
        %v1266 = vadd.f32 %v1218, %v1250
        %v1267 = vadd.f32 %v1219, %v1251
        %v1268 = vadd.f32 %v1220, %v1252
        %v1269 = vadd.f32 %v1221, %v1253
        %v1270 = vadd.f32 %v1222, %v1254
        %v1271 = vadd.f32 %v1223, %v1255
        %1272 = vmax.xlane.f32.xlu0 %v1256
        %v1273 = vpop.xlane.xlu0 %1272
        %1274 = vmax.xlane.f32.xlu0 %v1257
        %v1275 = vpop.xlane.xlu0 %1274
        %1276 = vmax.xlane.f32.xlu0 %v1258
        %v1277 = vpop.xlane.xlu0 %1276
        %1278 = vmax.xlane.f32.xlu0 %v1259
        %v1279 = vpop.xlane.xlu0 %1278
        %1280 = vmax.xlane.f32.xlu0 %v1260
        %v1281 = vpop.xlane.xlu0 %1280
        %1282 = vmax.xlane.f32.xlu0 %v1261
        %v1283 = vpop.xlane.xlu0 %1282
        %1284 = vmax.xlane.f32.xlu0 %v1262
        %v1285 = vpop.xlane.xlu0 %1284
        %1286 = vmax.xlane.f32.xlu0 %v1263
        %v1287 = vpop.xlane.xlu0 %1286
        %1288 = vmax.xlane.f32.xlu0 %v1264
        %v1289 = vpop.xlane.xlu0 %1288
        %1290 = vmax.xlane.f32.xlu0 %v1265
        %v1291 = vpop.xlane.xlu0 %1290
        %1292 = vmax.xlane.f32.xlu0 %v1266
        %v1293 = vpop.xlane.xlu0 %1292
        %1294 = vmax.xlane.f32.xlu0 %v1267
        %v1295 = vpop.xlane.xlu0 %1294
        %1296 = vmax.xlane.f32.xlu0 %v1268
        %v1297 = vpop.xlane.xlu0 %1296
        %1298 = vmax.xlane.f32.xlu0 %v1269
        %v1299 = vpop.xlane.xlu0 %1298
        %1300 = vmax.xlane.f32.xlu0 %v1270
        %v1301 = vpop.xlane.xlu0 %1300
        %1302 = vmax.xlane.f32.xlu0 %v1271
        %v1303 = vpop.xlane.xlu0 %1302
        %v1304 = vsub.f32 %v1256, %v1273
        %v1305 = vsub.f32 %v1257, %v1275
        %v1306 = vsub.f32 %v1258, %v1277
        %v1307 = vsub.f32 %v1259, %v1279
        %v1308 = vsub.f32 %v1260, %v1281
        %v1309 = vsub.f32 %v1261, %v1283
        %v1310 = vsub.f32 %v1262, %v1285
        %v1311 = vsub.f32 %v1263, %v1287
        %v1312 = vsub.f32 %v1264, %v1289
        %v1313 = vsub.f32 %v1265, %v1291
        %v1314 = vsub.f32 %v1266, %v1293
        %v1315 = vsub.f32 %v1267, %v1295
        %v1316 = vsub.f32 %v1268, %v1297
        %v1317 = vsub.f32 %v1269, %v1299
        %v1318 = vsub.f32 %v1270, %v1301
        %v1319 = vsub.f32 %v1271, %v1303
        %v1320 = vmul.f32 %v1304, 1.442695
        %v1321 = vpow.pop %v1320
        %v1322 = vmul.f32 %v1305, 1.442695
        %v1323 = vpow.pop %v1322
        %v1324 = vmul.f32 %v1306, 1.442695
        %v1325 = vpow.pop %v1324
        %v1326 = vmul.f32 %v1307, 1.442695
        %v1327 = vpow.pop %v1326
        %v1328 = vmul.f32 %v1308, 1.442695
        %v1329 = vpow.pop %v1328
        %v1330 = vmul.f32 %v1309, 1.442695
        %v1331 = vpow.pop %v1330
        %v1332 = vmul.f32 %v1310, 1.442695
        %v1333 = vpow.pop %v1332
        %v1334 = vmul.f32 %v1311, 1.442695
        %v1335 = vpow.pop %v1334
        %v1336 = vmul.f32 %v1312, 1.442695
        %v1337 = vpow.pop %v1336
        %v1338 = vmul.f32 %v1313, 1.442695
        %v1339 = vpow.pop %v1338
        %v1340 = vmul.f32 %v1314, 1.442695
        %v1341 = vpow.pop %v1340
        %v1342 = vmul.f32 %v1315, 1.442695
        %v1343 = vpow.pop %v1342
        %v1344 = vmul.f32 %v1316, 1.442695
        %v1345 = vpow.pop %v1344
        %v1346 = vmul.f32 %v1317, 1.442695
        %v1347 = vpow.pop %v1346
        %v1348 = vmul.f32 %v1318, 1.442695
        %v1349 = vpow.pop %v1348
        %v1350 = vmul.f32 %v1319, 1.442695
        %v1351 = vpow.pop %v1350
        %v1352 = vmul.f32 %v1321, %v1060
        %v1353 = vmul.f32 %v1323, %v1061
        %v1354 = vmul.f32 %v1325, %v1062
        %v1355 = vmul.f32 %v1327, %v1063
        %v1356 = vmul.f32 %v1329, %v1064
        %v1357 = vmul.f32 %v1331, %v1065
        %v1358 = vmul.f32 %v1333, %v1066
        %v1359 = vmul.f32 %v1335, %v1067
        %v1360 = vmul.f32 %v1337, %v1068
        %v1361 = vmul.f32 %v1339, %v1069
        %v1362 = vmul.f32 %v1341, %v1070
        %v1363 = vmul.f32 %v1343, %v1071
        %v1364 = vmul.f32 %v1345, %v1072
        %v1365 = vmul.f32 %v1347, %v1073
        %v1366 = vmul.f32 %v1349, %v1074
        %v1367 = vmul.f32 %v1351, %v1075
        %1368 = vadd.xlane.f32.xlu0 %v1352
        %v1369 = vpop.xlane.xlu0 %1368
        %1370 = vadd.xlane.f32.xlu0 %v1353
        %v1371 = vpop.xlane.xlu0 %1370
        %1372 = vadd.xlane.f32.xlu0 %v1354
        %v1373 = vpop.xlane.xlu0 %1372
        %1374 = vadd.xlane.f32.xlu0 %v1355
        %v1375 = vpop.xlane.xlu0 %1374
        %1376 = vadd.xlane.f32.xlu0 %v1356
        %v1377 = vpop.xlane.xlu0 %1376
        %1378 = vadd.xlane.f32.xlu0 %v1357
        %v1379 = vpop.xlane.xlu0 %1378
        %1380 = vadd.xlane.f32.xlu0 %v1358
        %v1381 = vpop.xlane.xlu0 %1380
        %1382 = vadd.xlane.f32.xlu0 %v1359
        %v1383 = vpop.xlane.xlu0 %1382
        %1384 = vadd.xlane.f32.xlu0 %v1360
        %v1385 = vpop.xlane.xlu0 %1384
        %1386 = vadd.xlane.f32.xlu0 %v1361
        %v1387 = vpop.xlane.xlu0 %1386
        %1388 = vadd.xlane.f32.xlu0 %v1362
        %v1389 = vpop.xlane.xlu0 %1388
        %1390 = vadd.xlane.f32.xlu0 %v1363
        %v1391 = vpop.xlane.xlu0 %1390
        %1392 = vadd.xlane.f32.xlu0 %v1364
        %v1393 = vpop.xlane.xlu0 %1392
        %1394 = vadd.xlane.f32.xlu0 %v1365
        %v1395 = vpop.xlane.xlu0 %1394
        %1396 = vadd.xlane.f32.xlu0 %v1366
        %v1397 = vpop.xlane.xlu0 %1396
        %1398 = vadd.xlane.f32.xlu0 %v1367
        %v1399 = vpop.xlane.xlu0 %1398
        %vm1400 = vcmp.gt.f32.partialorder %v1369, 0.0
        %vm1401 = vcmp.gt.f32.partialorder %v1371, 0.0
        %vm1402 = vcmp.gt.f32.partialorder %v1373, 0.0
        %vm1403 = vcmp.gt.f32.partialorder %v1375, 0.0
        %vm1404 = vcmp.gt.f32.partialorder %v1377, 0.0
        %vm1405 = vcmp.gt.f32.partialorder %v1379, 0.0
        %vm1406 = vcmp.gt.f32.partialorder %v1381, 0.0
        %vm1407 = vcmp.gt.f32.partialorder %v1383, 0.0
        %vm1408 = vcmp.gt.f32.partialorder %v1385, 0.0
        %vm1409 = vcmp.gt.f32.partialorder %v1387, 0.0
        %vm1410 = vcmp.gt.f32.partialorder %v1389, 0.0
        %vm1411 = vcmp.gt.f32.partialorder %v1391, 0.0
        %vm1412 = vcmp.gt.f32.partialorder %v1393, 0.0
        %vm1413 = vcmp.gt.f32.partialorder %v1395, 0.0
        %vm1414 = vcmp.gt.f32.partialorder %v1397, 0.0
        %vm1415 = vcmp.gt.f32.partialorder %v1399, 0.0
        %v1416 = vsel %vm1400, %v1369, 1.0
        %v1417 = vsel %vm1401, %v1371, 1.0
        %v1418 = vsel %vm1402, %v1373, 1.0
        %v1419 = vsel %vm1403, %v1375, 1.0
        %v1420 = vsel %vm1404, %v1377, 1.0
        %v1421 = vsel %vm1405, %v1379, 1.0
        %v1422 = vsel %vm1406, %v1381, 1.0
        %v1423 = vsel %vm1407, %v1383, 1.0
        %v1424 = vsel %vm1408, %v1385, 1.0
        %v1425 = vsel %vm1409, %v1387, 1.0
        %v1426 = vsel %vm1410, %v1389, 1.0
        %v1427 = vsel %vm1411, %v1391, 1.0
        %v1428 = vsel %vm1412, %v1393, 1.0
        %v1429 = vsel %vm1413, %v1395, 1.0
        %v1430 = vsel %vm1414, %v1397, 1.0
        %v1431 = vsel %vm1415, %v1399, 1.0
        %v1432 = vrcp.pop %v1416
        %v1433 = vrcp.pop %v1417
        %v1434 = vrcp.pop %v1418
        %v1435 = vrcp.pop %v1419
        %v1436 = vrcp.pop %v1420
        %v1437 = vrcp.pop %v1421
        %v1438 = vrcp.pop %v1422
        %v1439 = vrcp.pop %v1423
        %v1440 = vrcp.pop %v1424
        %v1441 = vrcp.pop %v1425
        %v1442 = vrcp.pop %v1426
        %v1443 = vrcp.pop %v1427
        %v1444 = vrcp.pop %v1428
        %v1445 = vrcp.pop %v1429
        %v1446 = vrcp.pop %v1430
        %v1447 = vrcp.pop %v1431
        %v1448 = vmul.f32 %v1352, %v1432
        %v1449 = vmul.f32 %v1353, %v1433
        %v1450 = vmul.f32 %v1354, %v1434
        %v1451 = vmul.f32 %v1355, %v1435
        %v1452 = vmul.f32 %v1356, %v1436
        %v1453 = vmul.f32 %v1357, %v1437
        %v1454 = vmul.f32 %v1358, %v1438
        %v1455 = vmul.f32 %v1359, %v1439
        %v1456 = vmul.f32 %v1360, %v1440
        %v1457 = vmul.f32 %v1361, %v1441
        %v1458 = vmul.f32 %v1362, %v1442
        %v1459 = vmul.f32 %v1363, %v1443
        %v1460 = vmul.f32 %v1364, %v1444
        %v1461 = vmul.f32 %v1365, %v1445
        %v1462 = vmul.f32 %v1366, %v1446
        %v1463 = vmul.f32 %v1367, %v1447
        %v1464 = vpack.c.bf16 %v1449, %v1448
        %v1465 = vpack.c.bf16 %v1451, %v1450
        %v1466 = vpack.c.bf16 %v1453, %v1452
        %v1467 = vpack.c.bf16 %v1455, %v1454
        %v1468 = vpack.c.bf16 %v1457, %v1456
        %v1469 = vpack.c.bf16 %v1459, %v1458
        %v1470 = vpack.c.bf16 %v1461, %v1460
        %v1471 = vpack.c.bf16 %v1463, %v1462
        %v1472 = vld [vmem:[#allocation2] sm:$0xf]
        %v1473 = vld [vmem:[#allocation2 + $0x4] sm:$0xf]
        %v1474 = vld [vmem:[#allocation2 + $0x8] sm:$0xf]
        %v1475 = vld [vmem:[#allocation2 + $0xc] sm:$0xf]
        %v1476 = vld [vmem:[#allocation2 + $0x10] sm:$0xf]
        %v1477 = vld [vmem:[#allocation2 + $0x14] sm:$0xf]
        %v1478 = vld [vmem:[#allocation2 + $0x18] sm:$0xf]
        %v1479 = vld [vmem:[#allocation2 + $0x1c] sm:$0xf]
        %v1480 = vld [vmem:[#allocation2 + $0x20] sm:$0xf]
        %v1481 = vld [vmem:[#allocation2 + $0x24] sm:$0xf]
        %v1482 = vld [vmem:[#allocation2 + $0x28] sm:$0xf]
        %v1483 = vld [vmem:[#allocation2 + $0x2c] sm:$0xf]
        %v1484 = vld [vmem:[#allocation2 + $0x30] sm:$0xf]
        %v1485 = vld [vmem:[#allocation2 + $0x34] sm:$0xf]
        %v1486 = vld [vmem:[#allocation2 + $0x38] sm:$0xf]
        %v1487 = vld [vmem:[#allocation2 + $0x3c] sm:$0xf]
        %v1488 = vld [vmem:[%s359] sm:$0x1]
        %v1490 = vperm.slane %v1488, 0
        %v1508 = vunpack.c.l.b16 %v1472
        %v1509 = vunpack.c.l.b16 %v1473
        %v1510 = vunpack.c.l.b16 %v1474
        %v1511 = vunpack.c.l.b16 %v1475
        %v1512 = vunpack.c.l.b16 %v1476
        %v1513 = vunpack.c.l.b16 %v1477
        %v1514 = vunpack.c.l.b16 %v1478
        %v1515 = vunpack.c.l.b16 %v1479
        %v1516 = vunpack.c.l.b16 %v1480
        %v1517 = vunpack.c.l.b16 %v1481
        %v1518 = vunpack.c.l.b16 %v1482
        %v1519 = vunpack.c.l.b16 %v1483
        %v1520 = vunpack.c.l.b16 %v1484
        %v1521 = vunpack.c.l.b16 %v1485
        %v1522 = vunpack.c.l.b16 %v1486
        %v1523 = vunpack.c.l.b16 %v1487
        %v1524 = vpack.c.b16 %v1509, %v1508
        %v1525 = vpack.c.b16 %v1511, %v1510
        %v1526 = vpack.c.b16 %v1513, %v1512
        %v1527 = vpack.c.b16 %v1515, %v1514
        %v1528 = vpack.c.b16 %v1517, %v1516
        %v1529 = vpack.c.b16 %v1519, %v1518
        %v1530 = vpack.c.b16 %v1521, %v1520
        %v1531 = vpack.c.b16 %v1523, %v1522
        %1540 = vmatpush.bf16.msra.mxu0 %v1531
        %1541 = vmatpush.bf16.msra.mxu0 %v1530
        %1542 = vmatpush.bf16.msra.mxu0 %v1529
        %1543 = vmatpush.bf16.msra.mxu0 %v1528
        %1544 = vmatpush.bf16.msra.mxu0 %v1527
        %1545 = vmatpush.bf16.msra.mxu0 %v1526
        %1546 = vmatpush.bf16.msra.mxu0 %v1525
        %1547 = vmatpush.bf16.msra.mxu0 %v1524
        %1548 = vmatmul.bf16.gmra.mxu0 %v1464
        %v1549 = vpop.f32.mrf.mxu0
        %v1550 = vadd.f32 %v1490, %v1549
        %v1551 = vpop.f32.mrf.mxu0
        %v1552 = vadd.f32 %v1490, %v1551
        %1553 = vmatmul.bf16.gmra.mxu0 %v1465
        %v1554 = vpop.f32.mrf.mxu0
        %v1555 = vadd.f32 %v1490, %v1554
        %v1556 = vpop.f32.mrf.mxu0
        %v1557 = vadd.f32 %v1490, %v1556
        %1558 = vmatmul.bf16.gmra.mxu0 %v1466
        %v1559 = vpop.f32.mrf.mxu0
        %v1560 = vadd.f32 %v1490, %v1559
        %v1561 = vpop.f32.mrf.mxu0
        %v1562 = vadd.f32 %v1490, %v1561
        %1563 = vmatmul.bf16.gmra.mxu0 %v1467
        %v1564 = vpop.f32.mrf.mxu0
        %v1565 = vadd.f32 %v1490, %v1564
        %v1566 = vpop.f32.mrf.mxu0
        %v1567 = vadd.f32 %v1490, %v1566
        %1568 = vmatmul.bf16.gmra.mxu0 %v1468
        %v1569 = vpop.f32.mrf.mxu0
        %v1570 = vadd.f32 %v1490, %v1569
        %v1571 = vpop.f32.mrf.mxu0
        %v1572 = vadd.f32 %v1490, %v1571
        %1573 = vmatmul.bf16.gmra.mxu0 %v1469
        %v1574 = vpop.f32.mrf.mxu0
        %v1575 = vadd.f32 %v1490, %v1574
        %v1576 = vpop.f32.mrf.mxu0
        %v1577 = vadd.f32 %v1490, %v1576
        %1578 = vmatmul.bf16.gmra.mxu0 %v1470
        %v1579 = vpop.f32.mrf.mxu0
        %v1580 = vadd.f32 %v1490, %v1579
        %v1581 = vpop.f32.mrf.mxu0
        %v1582 = vadd.f32 %v1490, %v1581
        %1583 = vmatmul.bf16.gmra.mxu0 %v1471
        %v1584 = vpop.f32.mrf.mxu0
        %v1585 = vadd.f32 %v1490, %v1584
        %v1586 = vpop.f32.mrf.mxu0
        %v1587 = vadd.f32 %v1490, %v1586
        %1588 = vdwg.mxu0
        // Predicated region
        $region73: #{tpu_custom_call.1} parent=43 // pred_check
          %p1589 = pneg %p411
        $region74: #{tpu_custom_call.1} parent=43 // pred_check_branch
          %1591 = sbr.rel (%p1589) target = $region76
        $region75: #{tpu_custom_call.1} parent=43 // pred_region
          %v1592 = vmax.f32 %v1550, 0.0
          %v1593 = vmax.f32 %v1552, 0.0
          %v1594 = vmax.f32 %v1555, 0.0
          %v1595 = vmax.f32 %v1557, 0.0
          %v1596 = vmax.f32 %v1560, 0.0
          %v1597 = vmax.f32 %v1562, 0.0
          %v1598 = vmax.f32 %v1565, 0.0
          %v1599 = vmax.f32 %v1567, 0.0
          %v1600 = vmax.f32 %v1570, 0.0
          %v1601 = vmax.f32 %v1572, 0.0
          %v1602 = vmax.f32 %v1575, 0.0
          %v1603 = vmax.f32 %v1577, 0.0
          %v1604 = vmax.f32 %v1580, 0.0
          %v1605 = vmax.f32 %v1582, 0.0
          %v1606 = vmax.f32 %v1585, 0.0
          %v1607 = vmax.f32 %v1587, 0.0
          %v1608 = vpack.c.bf16 %v1592, %v1592
          %v1609 = vpack.c.bf16 %v1593, %v1593
          %v1610 = vpack.c.bf16 %v1594, %v1594
          %v1611 = vpack.c.bf16 %v1595, %v1595
          %v1612 = vpack.c.bf16 %v1596, %v1596
          %v1613 = vpack.c.bf16 %v1597, %v1597
          %v1614 = vpack.c.bf16 %v1598, %v1598
          %v1615 = vpack.c.bf16 %v1599, %v1599
          %v1616 = vpack.c.bf16 %v1600, %v1600
          %v1617 = vpack.c.bf16 %v1601, %v1601
          %v1618 = vpack.c.bf16 %v1602, %v1602
          %v1619 = vpack.c.bf16 %v1603, %v1603
          %v1620 = vpack.c.bf16 %v1604, %v1604
          %v1621 = vpack.c.bf16 %v1605, %v1605
          %v1622 = vpack.c.bf16 %v1606, %v1606
          %v1623 = vpack.c.bf16 %v1607, %v1607
          %s1624 = sshra.s32 %s1022, 3
          %s1625 = sand.u32 %s1022, 7
          %s1626 = smul.addr %s1624, 4
          %s1627 = scalar_lea.vmem [#allocation3], %s1626
          %1628 = vst [vmem:[%s1627] sm:$0xf] %v1608
          %1629 = vst [vmem:[%s1627 + $0x4] sm:$0xf] %v1609
          %1630 = vst [vmem:[%s1627 + $0x8] sm:$0xf] %v1610
          %1631 = vst [vmem:[%s1627 + $0xc] sm:$0xf] %v1611
          %1632 = vst [vmem:[%s1627 + $0x10] sm:$0xf] %v1612
          %1633 = vst [vmem:[%s1627 + $0x14] sm:$0xf] %v1613
          %1634 = vst [vmem:[%s1627 + $0x18] sm:$0xf] %v1614
          %1635 = vst [vmem:[%s1627 + $0x1c] sm:$0xf] %v1615
          %1636 = vst [vmem:[%s1627 + $0x20] sm:$0xf] %v1616
          %1637 = vst [vmem:[%s1627 + $0x24] sm:$0xf] %v1617
          %1638 = vst [vmem:[%s1627 + $0x28] sm:$0xf] %v1618
          %1639 = vst [vmem:[%s1627 + $0x2c] sm:$0xf] %v1619
          %1640 = vst [vmem:[%s1627 + $0x30] sm:$0xf] %v1620
          %1641 = vst [vmem:[%s1627 + $0x34] sm:$0xf] %v1621
          %1642 = vst [vmem:[%s1627 + $0x38] sm:$0xf] %v1622
          %1643 = vst [vmem:[%s1627 + $0x3c] sm:$0xf] %v1623
        $region76: #{tpu_custom_call.1} parent=43 // pred_fallthru
          _
        // Predicated region
        $region77: #{tpu_custom_call.1} parent=43 // pred_check
          %p1644 = pneg %p717
        $region78: #{tpu_custom_call.1} parent=43 // pred_check_branch
          %1646 = sbr.rel (%p1644) target = $region80
        $region79: #{tpu_custom_call.1} parent=43 // pred_region
          %1647 = vst [vmem:[%s404] sm:$0xff] %v1550
          %1648 = vst [vmem:[%s404 + $0x8] sm:$0xff] %v1552
          %1649 = vst [vmem:[%s404 + $0x10] sm:$0xff] %v1555
          %1650 = vst [vmem:[%s404 + $0x18] sm:$0xff] %v1557
          %1651 = vst [vmem:[%s404 + $0x20] sm:$0xff] %v1560
          %1652 = vst [vmem:[%s404 + $0x28] sm:$0xff] %v1562
          %1653 = vst [vmem:[%s404 + $0x30] sm:$0xff] %v1565
          %1654 = vst [vmem:[%s404 + $0x38] sm:$0xff] %v1567
          %1655 = vst [vmem:[%s404 + $0x40] sm:$0xff] %v1570
          %1656 = vst [vmem:[%s404 + $0x48] sm:$0xff] %v1572
          %1657 = vst [vmem:[%s404 + $0x50] sm:$0xff] %v1575
          %1658 = vst [vmem:[%s404 + $0x58] sm:$0xff] %v1577
          %1659 = vst [vmem:[%s404 + $0x60] sm:$0xff] %v1580
          %1660 = vst [vmem:[%s404 + $0x68] sm:$0xff] %v1582
          %1661 = vst [vmem:[%s404 + $0x70] sm:$0xff] %v1585
          %1662 = vst [vmem:[%s404 + $0x78] sm:$0xff] %v1587
        $region80: #{tpu_custom_call.1} parent=43 // pred_fallthru
          _
        %s1663 = sand.u32 %s200, 1
        %s1664 = scalar_lea.sflag [#allocation8], %s1663
        %s1665 = sand.u32 %s200, 1
        %s1666 = smul.addr %s1665, 128
        %s1667 = scalar_lea.vmem [#allocation15], %s1666
        // Predicated region
        $region81: #{tpu_custom_call.1} parent=43 // pred_check
          %p1668 = pneg %p210
        $region82: #{tpu_custom_call.1} parent=43 // pred_check_branch
          %1670 = sbr.rel (%p1668) target = $region84
        $region83: #{tpu_custom_call.1} parent=43 // pred_region
          %s1671 = smul.u32 %s31, %s32
          %s1672 = smul.u32 16, %s1671
          %1674 = vsyncadd %s1664, 0
          %s1675 = smul.addr %s1672, 8
          %s1676 = scalar_lea.hbm %s6, %s1675
          %s1677 = sshll.u32 %s1667, 4
          %s1678 = int_to_ptr.vmem [resolvable:$true] %s1677
          %s1679 = sshll.u32 %s1676, 4
          %s1680 = int_to_ptr.hbm [resolvable:$true] %s1679
          %1685 = dma.vmem_to_hbm [thread:$0]  %s1678, 2048, %s1680, %s1664, 128, 128, 8
        $region84: #{tpu_custom_call.1} parent=43 // pred_fallthru
          _
      $region44: #{tpu_custom_call.1} parent=5 // pred_fallthru
        _
      %p1686 = scmp.le.s32.totalorder 2, %s22
      // Predicated region
      $region85: #{tpu_custom_call.1} parent=5 // pred_check
        %p1687 = pneg %p1686
      $region86: #{tpu_custom_call.1} parent=5 // pred_check_branch
        %1689 = sbr.rel (%p1687) target = $region88
      $region87: #{tpu_custom_call.1} parent=5 // pred_region
        %s1690 = ssub.s32 %s22, 2
        // Predicated region
        $region89: #{tpu_custom_call.1} parent=87 // pred_check
          %p1691 = pneg %p216
        $region90: #{tpu_custom_call.1} parent=87 // pred_check_branch
          %1693 = sbr.rel (%p1691) target = $region92
        $region91: #{tpu_custom_call.1} parent=87 // pred_region
          %s1694 = sand.u32 %s201, 1
          %s1695 = scalar_lea.sflag [#allocation8], %s1694
          %s1696 = sand.u32 %s201, 1
          %s1697 = smul.addr %s1696, 128
          %s1698 = scalar_lea.vmem [#allocation15], %s1697
          %1700 = dma.done %s1695, 2048
        $region92: #{tpu_custom_call.1} parent=87 // pred_fallthru
          _
      $region88: #{tpu_custom_call.1} parent=5 // pred_fallthru
        _
    $region6: #{tpu_custom_call.1} parent=1 // loop_footer
      %s26 = sadd.s32 1, %s22
    $region7: #{tpu_custom_call.1} parent=1 // loop_footer_branch
      %21 = sbr.rel target = $region3
    $region8: #{tpu_custom_call.1} parent=1 // loop_exit
      _
    %1701 = vsyncpa [#allocation7], 1
    %s1702 = scalar_lea.sflag [#allocation7], 1
    %1703 = vsyncpa %s1702, 1
    %1704 = vsyncpa [#allocation10], 1
    %s1705 = scalar_lea.sflag [#allocation10], 1
    %1706 = vsyncpa %s1705, 1
    %1707 = vsyncpa [#allocation13], 1
    %s1708 = scalar_lea.sflag [#allocation13], 1
    %1709 = vsyncpa %s1708, 1
    %1710 = vsyncpa [#allocation8], 1
    %s1711 = scalar_lea.sflag [#allocation8], 1
    %1712 = vsyncpa %s1711, 1

</llo_original>
